<compile_context>
chip_gen: v7x
topology: tpu7x:2x2x1
jax: 0.10.0
libtpu: 0.0.40
codegen_flags: <defaults>
</compile_context>

<pallas_src>
import jax
import jax.numpy as jnp
from jax.experimental import pallas as pl
from jax.experimental.pallas import tpu as pltpu

Z_DIM = 10
N_CLASSES = 10
HIDDEN = 512
K_PAD = 32           # layer-1 contraction dim: 10 -> 32 (small aligned pad; was 128)
HEAD_PAD = 128       # fused [disc | clf | zeros] head padded to a lane-dense width


def _clf_disc_kernel(z_ref, w1_ref, w234_ref, b_trunk_ref, wh_ref, bh_ref, out_ref):
    # Layer 1: (TB, 32) bf16 @ (32, 512) bf16 -> f32 accumulate.
    h = jnp.dot(z_ref[...], w1_ref[...], preferred_element_type=jnp.float32)
    h = jnp.maximum(h + b_trunk_ref[0:1, :], 0.0)

    # Layers 2-4: stacked (3, 512, 512) bf16 weights; bias-add + ReLU kept in f32
    # (v5e VPU has no bf16 elementwise path).
    for k in range(3):
        h = jnp.dot(h.astype(jnp.bfloat16), w234_ref[k],
                    preferred_element_type=jnp.float32)
        h = jnp.maximum(h + b_trunk_ref[k + 1:k + 2, :], 0.0)

    # Fused heads: [disc logit | clf logits | zero pad] -> one lane-dense (TB, 128)
    # store; written as bf16 to halve per-sample writeback.
    out = jnp.dot(h.astype(jnp.bfloat16), wh_ref[...],
                  preferred_element_type=jnp.float32) + bh_ref[...]
    out_ref[...] = out.astype(out_ref.dtype)


def pack_params(params):
    """One-time packing of f32 PyTorch-style params into kernel-ready operands."""
    w1p = jnp.zeros((K_PAD, HIDDEN), jnp.float32).at[:Z_DIM, :].set(params["w1"])
    w234 = jnp.stack([params["w2"], params["w3"], params["w4"]], axis=0)
    b_trunk = jnp.stack([params["b1"], params["b2"],
                         params["b3"], params["b4"]], axis=0)          # (4, 512) f32
    wh = jnp.zeros((HIDDEN, HEAD_PAD), jnp.float32)
    wh = wh.at[:, 0:1].set(params["wd"]).at[:, 1:1 + N_CLASSES].set(params["wc"])
    bh = jnp.zeros((1, HEAD_PAD), jnp.float32)
    bh = bh.at[0, 0].set(params["bd"][0]).at[0, 1:1 + N_CLASSES].set(params["bc"])
    return {
        "w1": w1p.astype(jnp.bfloat16),       # (32, 512)      bf16
        "w234": w234.astype(jnp.bfloat16),    # (3, 512, 512)  bf16
        "b_trunk": b_trunk,                   # (4, 512)       f32
        "wh": wh.astype(jnp.bfloat16),        # (512, 128)     bf16
        "bh": bh,                             # (1, 128)       f32
    }


def clf_discriminator_forward(z, packed, *, tile_b=256):
    """z: (B, Z_DIM) float. packed: output of pack_params.
    Returns (disc (B, 1) f32, clf (B, N_CLASSES) f32)."""
    B = z.shape[0]
    if B <= tile_b:
        tb = max(8, -(-B // 8) * 8)       # single tile, rounded up to a sublane multiple
    else:
        tb = tile_b                       # multiple of 8 (default 256)
    n_tiles = -(-B // tb)
    b_pad = n_tiles * tb

    z_pad = jnp.zeros((b_pad, K_PAD), jnp.float32)
    z_pad = z_pad.at[:B, :Z_DIM].set(z.astype(jnp.float32)).astype(jnp.bfloat16)

    operands = (z_pad, packed["w1"], packed["w234"], packed["b_trunk"],
                packed["wh"], packed["bh"])

    # z / out tiled along batch; every weight operand uses a constant index_map so it is
    # DMA'd once and kept VMEM-resident across all batch tiles (no re-fetch per tile).
    in_specs = [
        pl.BlockSpec((tb, K_PAD), lambda i: (i, 0)),            # z        (batch-tiled)
        pl.BlockSpec((K_PAD, HIDDEN), lambda i: (0, 0)),        # w1       (resident)
        pl.BlockSpec((3, HIDDEN, HIDDEN), lambda i: (0, 0, 0)), # w2/w3/w4 (resident)
        pl.BlockSpec((4, HIDDEN), lambda i: (0, 0)),            # biases   (resident)
        pl.BlockSpec((HIDDEN, HEAD_PAD), lambda i: (0, 0)),     # head W   (resident)
        pl.BlockSpec((1, HEAD_PAD), lambda i: (0, 0)),          # head b   (resident)
    ]
    out_specs = pl.BlockSpec((tb, HEAD_PAD), lambda i: (i, 0))

    weight_bytes = int(sum(int(x.size) * x.dtype.itemsize for x in operands[1:]))
    flops = 2 * b_pad * (K_PAD * HIDDEN + 3 * HIDDEN * HIDDEN + HIDDEN * HEAD_PAD)
    bytes_accessed = weight_bytes + b_pad * K_PAD * 2 + b_pad * HEAD_PAD * 2

    fused = pl.pallas_call(
        _clf_disc_kernel,
        out_shape=jax.ShapeDtypeStruct((b_pad, HEAD_PAD), jnp.bfloat16),
        grid=(n_tiles,),
        in_specs=in_specs,
        out_specs=out_specs,
        compiler_params=pltpu.CompilerParams(
            dimension_semantics=("parallel",)),       # v7x: shard batch over both TCs
        cost_estimate=pl.CostEstimate(flops=flops, transcendentals=0,
                                      bytes_accessed=bytes_accessed),
    )(*operands)

    fused = fused[:B].astype(jnp.float32)
    disc_out = jax.nn.sigmoid(fused[:, 0:1])          # column 0 (padding never read)
    clf_out = fused[:, 1:1 + N_CLASSES]
    return disc_out, clf_out


def _kaiming_normal(key, fan_in, fan_out):
    # torch.nn.init.kaiming_normal_ default: fan_in mode, gain = sqrt(2).
    std = (2.0 / fan_in) ** 0.5
    # stored (in, out) so the kernel computes x @ W directly.
    return jax.random.normal(key, (fan_in, fan_out), dtype=jnp.float32) * std


def init_params(key):
    ks = jax.random.split(key, 6)
    return {
        "w1": _kaiming_normal(ks[0], Z_DIM, HIDDEN), "b1": jnp.zeros((HIDDEN,), jnp.float32),
        "w2": _kaiming_normal(ks[1], HIDDEN, HIDDEN), "b2": jnp.zeros((HIDDEN,), jnp.float32),
        "w3": _kaiming_normal(ks[2], HIDDEN, HIDDEN), "b3": jnp.zeros((HIDDEN,), jnp.float32),
        "w4": _kaiming_normal(ks[3], HIDDEN, HIDDEN), "b4": jnp.zeros((HIDDEN,), jnp.float32),
        "wd": _kaiming_normal(ks[4], HIDDEN, 1), "bd": jnp.zeros((1,), jnp.float32),
        "wc": _kaiming_normal(ks[5], HIDDEN, N_CLASSES), "bc": jnp.zeros((N_CLASSES,), jnp.float32),
    }


def ref_matched(z, pk):
    """Same dtype chain as the kernel (bf16 weights/activations, f32 accum, bf16 out)."""
    B = z.shape[0]
    zp = jnp.zeros((B, K_PAD), jnp.float32).at[:, :Z_DIM].set(z).astype(jnp.bfloat16)
    h = jnp.maximum(jnp.dot(zp, pk["w1"], preferred_element_type=jnp.float32)
                    + pk["b_trunk"][0:1], 0.0)
    for k in range(3):
        h = jnp.maximum(jnp.dot(h.astype(jnp.bfloat16), pk["w234"][k],
                                preferred_element_type=jnp.float32)
                        + pk["b_trunk"][k + 1:k + 2], 0.0)
    fused = (jnp.dot(h.astype(jnp.bfloat16), pk["wh"],
                     preferred_element_type=jnp.float32) + pk["bh"])
    fused = fused.astype(jnp.bfloat16).astype(jnp.float32)
    return jax.nn.sigmoid(fused[:, 0:1]), fused[:, 1:1 + N_CLASSES]


def ref_f32(z, p):
    """Original module numerics (full f32)."""
    h = z
    for w, b in ((p["w1"], p["b1"]), (p["w2"], p["b2"]),
                 (p["w3"], p["b3"]), (p["w4"], p["b4"])):
        h = jnp.maximum(h @ w + b[None, :], 0.0)
    return jax.nn.sigmoid(h @ p["wd"] + p["bd"][None, :]), h @ p["wc"] + p["bc"][None, :]


if __name__ == "__main__":
    key = jax.random.PRNGKey(0)
    pkey, zkey = jax.random.split(key)
    params = init_params(pkey)
    packed = pack_params(params)

    fwd = jax.jit(clf_discriminator_forward)

    # --- small-shape demo call (B=8, single batch tile) ---
    B = 8
    z = jax.random.normal(zkey, (B, Z_DIM), dtype=jnp.float32)
    disc_out, clf_out = fwd(z, packed)
    jax.block_until_ready((disc_out, clf_out))
    assert disc_out.shape == (B, 1) and clf_out.shape == (B, N_CLASSES)

    # matched-precision reference (same bf16 chain): tight-ish check (1 bf16 ulp slack)
    rd_m, rc_m = ref_matched(z, packed)
    assert jnp.allclose(disc_out, rd_m, atol=5e-3, rtol=5e-3)
    assert jnp.allclose(clf_out, rc_m, atol=3e-2, rtol=3e-2)

    # full-f32 reference (original module numerics): loose check (bf16 weight drift)
    rd_f, rc_f = ref_f32(z, params)
    assert jnp.allclose(disc_out, rd_f, atol=5e-2, rtol=5e-2)
    assert jnp.allclose(clf_out, rc_f, atol=5e-1, rtol=1e-1)

    # --- batch-gridded path: B not a multiple of the tile, weights resident across tiles ---
    B2 = 300
    z2 = jax.random.normal(jax.random.PRNGKey(1), (B2, Z_DIM), dtype=jnp.float32)
    fwd_tiled = jax.jit(lambda zz, pk: clf_discriminator_forward(zz, pk, tile_b=128))
    d2, c2 = fwd_tiled(z2, packed)
    jax.block_until_ready((d2, c2))
    assert d2.shape == (B2, 1) and c2.shape == (B2, N_CLASSES)
    rd2, rc2 = ref_matched(z2, packed)
    assert jnp.allclose(d2, rd2, atol=5e-3, rtol=5e-3)
    assert jnp.allclose(c2, rc2, atol=3e-2, rtol=3e-2)

    print("KERNEL_OK")
</pallas_src>

<mosaic_0001>
module attributes {stable_mosaic.version = 11 : i64} {
  func.func @_clf_disc_kernel(%arg0: i32, %arg1: memref<8x32xbf16, #tpu.memory_space<vmem>>, %arg2: memref<32x512xbf16, #tpu.memory_space<vmem>>, %arg3: memref<3x512x512xbf16, #tpu.memory_space<vmem>>, %arg4: memref<4x512xf32, #tpu.memory_space<vmem>>, %arg5: memref<512x128xbf16, #tpu.memory_space<vmem>>, %arg6: memref<1x128xf32, #tpu.memory_space<vmem>>, %arg7: memref<8x128xbf16, #tpu.memory_space<vmem>>) attributes {dimension_semantics = [#tpu.dimension_semantics<parallel>], iteration_bounds = array<i64: 1>, scalar_prefetch = 0 : i64, scratch_operands = 0 : i64, tpu.core_type = #tpu.core_type<tc>, window_params = [{transform_indices = @transform_0, window_bounds = array<i64: 8, 32>}, {pipeline_mode = #tpu.pipeline_mode<synchronous>, transform_indices = @transform_1, window_bounds = array<i64: 32, 512>}, {pipeline_mode = #tpu.pipeline_mode<synchronous>, transform_indices = @transform_2, window_bounds = array<i64: 3, 512, 512>}, {pipeline_mode = #tpu.pipeline_mode<synchronous>, transform_indices = @transform_3, window_bounds = array<i64: 4, 512>}, {pipeline_mode = #tpu.pipeline_mode<synchronous>, transform_indices = @transform_4, window_bounds = array<i64: 512, 128>}, {pipeline_mode = #tpu.pipeline_mode<synchronous>, transform_indices = @transform_5, window_bounds = array<i64: 1, 128>}, {transform_indices = @transform_6, window_bounds = array<i64: 8, 128>}]} {
    %c0 = arith.constant 0 : index
    %c0_0 = arith.constant 0 : index
    %0 = vector.load %arg1[%c0, %c0_0] : memref<8x32xbf16, #tpu.memory_space<vmem>>, vector<8x32xbf16>
    %c0_1 = arith.constant 0 : index
    %c0_2 = arith.constant 0 : index
    %1 = vector.load %arg2[%c0_1, %c0_2] : memref<32x512xbf16, #tpu.memory_space<vmem>>, vector<32x512xbf16>
    %cst = arith.constant dense<0.000000e+00> : vector<8x512xf32>
    %2 = tpu.matmul %0, %1, %cst {dimension_numbers = #tpu.dot_dimension_numbers<[1], [0], [0], [1], [0, 0, 1, 1], [], []>} : vector<8x32xbf16>, vector<32x512xbf16>, vector<8x512xf32> -> vector<8x512xf32>
    %c0_3 = arith.constant 0 : index
    %c0_4 = arith.constant 0 : index
    %3 = vector.load %arg4[%c0_3, %c0_4] : memref<4x512xf32, #tpu.memory_space<vmem>>, vector<1x512xf32>
    %4 = vector.broadcast %3 : vector<1x512xf32> to vector<8x512xf32>
    %5 = arith.addf %2, %4 : vector<8x512xf32>
    %cst_5 = arith.constant 0.000000e+00 : f32
    %6 = vector.broadcast %cst_5 : f32 to vector<8x512xf32>
    %7 = arith.maximumf %5, %6 : vector<8x512xf32>
    %8 = arith.truncf %7 : vector<8x512xf32> to vector<8x512xbf16>
    %c0_6 = arith.constant 0 : index
    %c0_7 = arith.constant 0 : index
    %c0_8 = arith.constant 0 : index
    %9 = vector.load %arg3[%c0_6, %c0_7, %c0_8] : memref<3x512x512xbf16, #tpu.memory_space<vmem>>, vector<1x512x512xbf16>
    %10 = vector.shape_cast %9 : vector<1x512x512xbf16> to vector<512x512xbf16>
    %cst_9 = arith.constant dense<0.000000e+00> : vector<8x512xf32>
    %11 = tpu.matmul %8, %10, %cst_9 {dimension_numbers = #tpu.dot_dimension_numbers<[1], [0], [0], [1], [0, 0, 1, 1], [], []>} : vector<8x512xbf16>, vector<512x512xbf16>, vector<8x512xf32> -> vector<8x512xf32>
    %c1 = arith.constant 1 : index
    %c0_10 = arith.constant 0 : index
    %12 = vector.load %arg4[%c1, %c0_10] : memref<4x512xf32, #tpu.memory_space<vmem>>, vector<1x512xf32>
    %13 = vector.broadcast %12 : vector<1x512xf32> to vector<8x512xf32>
    %14 = arith.addf %11, %13 : vector<8x512xf32>
    %cst_11 = arith.constant 0.000000e+00 : f32
    %15 = vector.broadcast %cst_11 : f32 to vector<8x512xf32>
    %16 = arith.maximumf %14, %15 : vector<8x512xf32>
    %17 = arith.truncf %16 : vector<8x512xf32> to vector<8x512xbf16>
    %c1_12 = arith.constant 1 : index
    %c0_13 = arith.constant 0 : index
    %c0_14 = arith.constant 0 : index
    %18 = vector.load %arg3[%c1_12, %c0_13, %c0_14] : memref<3x512x512xbf16, #tpu.memory_space<vmem>>, vector<1x512x512xbf16>
    %19 = vector.shape_cast %18 : vector<1x512x512xbf16> to vector<512x512xbf16>
    %cst_15 = arith.constant dense<0.000000e+00> : vector<8x512xf32>
    %20 = tpu.matmul %17, %19, %cst_15 {dimension_numbers = #tpu.dot_dimension_numbers<[1], [0], [0], [1], [0, 0, 1, 1], [], []>} : vector<8x512xbf16>, vector<512x512xbf16>, vector<8x512xf32> -> vector<8x512xf32>
    %c2 = arith.constant 2 : index
    %c0_16 = arith.constant 0 : index
    %21 = vector.load %arg4[%c2, %c0_16] : memref<4x512xf32, #tpu.memory_space<vmem>>, vector<1x512xf32>
    %22 = vector.broadcast %21 : vector<1x512xf32> to vector<8x512xf32>
    %23 = arith.addf %20, %22 : vector<8x512xf32>
    %cst_17 = arith.constant 0.000000e+00 : f32
    %24 = vector.broadcast %cst_17 : f32 to vector<8x512xf32>
    %25 = arith.maximumf %23, %24 : vector<8x512xf32>
    %26 = arith.truncf %25 : vector<8x512xf32> to vector<8x512xbf16>
    %c2_18 = arith.constant 2 : index
    %c0_19 = arith.constant 0 : index
    %c0_20 = arith.constant 0 : index
    %27 = vector.load %arg3[%c2_18, %c0_19, %c0_20] : memref<3x512x512xbf16, #tpu.memory_space<vmem>>, vector<1x512x512xbf16>
    %28 = vector.shape_cast %27 : vector<1x512x512xbf16> to vector<512x512xbf16>
    %cst_21 = arith.constant dense<0.000000e+00> : vector<8x512xf32>
    %29 = tpu.matmul %26, %28, %cst_21 {dimension_numbers = #tpu.dot_dimension_numbers<[1], [0], [0], [1], [0, 0, 1, 1], [], []>} : vector<8x512xbf16>, vector<512x512xbf16>, vector<8x512xf32> -> vector<8x512xf32>
    %c3 = arith.constant 3 : index
    %c0_22 = arith.constant 0 : index
    %30 = vector.load %arg4[%c3, %c0_22] : memref<4x512xf32, #tpu.memory_space<vmem>>, vector<1x512xf32>
    %31 = vector.broadcast %30 : vector<1x512xf32> to vector<8x512xf32>
    %32 = arith.addf %29, %31 : vector<8x512xf32>
    %cst_23 = arith.constant 0.000000e+00 : f32
    %33 = vector.broadcast %cst_23 : f32 to vector<8x512xf32>
    %34 = arith.maximumf %32, %33 : vector<8x512xf32>
    %35 = arith.truncf %34 : vector<8x512xf32> to vector<8x512xbf16>
    %c0_24 = arith.constant 0 : index
    %c0_25 = arith.constant 0 : index
    %36 = vector.load %arg5[%c0_24, %c0_25] : memref<512x128xbf16, #tpu.memory_space<vmem>>, vector<512x128xbf16>
    %cst_26 = arith.constant dense<0.000000e+00> : vector<8x128xf32>
    %37 = tpu.matmul %35, %36, %cst_26 {dimension_numbers = #tpu.dot_dimension_numbers<[1], [0], [0], [1], [0, 0, 1, 1], [], []>} : vector<8x512xbf16>, vector<512x128xbf16>, vector<8x128xf32> -> vector<8x128xf32>
    %c0_27 = arith.constant 0 : index
    %c0_28 = arith.constant 0 : index
    %38 = vector.load %arg6[%c0_27, %c0_28] : memref<1x128xf32, #tpu.memory_space<vmem>>, vector<1x128xf32>
    %39 = vector.broadcast %38 : vector<1x128xf32> to vector<8x128xf32>
    %40 = arith.addf %37, %39 : vector<8x128xf32>
    %41 = arith.truncf %40 : vector<8x128xf32> to vector<8x128xbf16>
    %c0_29 = arith.constant 0 : index
    %c0_30 = arith.constant 0 : index
    %42 = vector.load %arg7[%c0_29, %c0_30] : memref<8x128xbf16, #tpu.memory_space<vmem>>, vector<8x128xbf16>
    tpu.vector_store %arg7[%c0_29, %c0_30], %41 {strides = array<i32>} : memref<8x128xbf16, #tpu.memory_space<vmem>>, vector<8x128xbf16>,
    return
  }
  func.func @transform_0(%arg0: i32) -> (i32, i32) {
    %c0_i32 = arith.constant 0 : i32
    %c0_i32_0 = arith.constant 0 : i32
    return %arg0, %c0_i32 : i32, i32
  }
  func.func @transform_1(%arg0: i32) -> (i32, i32) {
    %c0_i32 = arith.constant 0 : i32
    %c0_i32_0 = arith.constant 0 : i32
    %c0_i32_1 = arith.constant 0 : i32
    return %c0_i32, %c0_i32_0 : i32, i32
  }
  func.func @transform_2(%arg0: i32) -> (i32, i32, i32) {
    %c0_i32 = arith.constant 0 : i32
    %c0_i32_0 = arith.constant 0 : i32
    %c0_i32_1 = arith.constant 0 : i32
    %c0_i32_2 = arith.constant 0 : i32
    return %c0_i32, %c0_i32_0, %c0_i32_1 : i32, i32, i32
  }
  func.func @transform_3(%arg0: i32) -> (i32, i32) {
    %c0_i32 = arith.constant 0 : i32
    %c0_i32_0 = arith.constant 0 : i32
    %c0_i32_1 = arith.constant 0 : i32
    return %c0_i32, %c0_i32_0 : i32, i32
  }
  func.func @transform_4(%arg0: i32) -> (i32, i32) {
    %c0_i32 = arith.constant 0 : i32
    %c0_i32_0 = arith.constant 0 : i32
    %c0_i32_1 = arith.constant 0 : i32
    return %c0_i32, %c0_i32_0 : i32, i32
  }
  func.func @transform_5(%arg0: i32) -> (i32, i32) {
    %c0_i32 = arith.constant 0 : i32
    %c0_i32_0 = arith.constant 0 : i32
    %c0_i32_1 = arith.constant 0 : i32
    return %c0_i32, %c0_i32_0 : i32, i32
  }
  func.func @transform_6(%arg0: i32) -> (i32, i32) {
    %c0_i32 = arith.constant 0 : i32
    %c0_i32_0 = arith.constant 0 : i32
    return %arg0, %c0_i32 : i32, i32
  }
}

</mosaic_0001>

<llo_original>
// kernel: clf_discriminator_forward.1
$region0: #{clf_discriminator_forward.1}
  #allocation0 [shape = 'u32[]', space=smem, size = 0x4, offset = 0x4, fixed_abs, tag = 'smem constant byte address 0x4 - core index']
  #allocation1 [shape = 'u32[144,128]{1,0:T(1,128)}', space=vmem, size = 0x12000, scoped, tag = 'internal scratch']
  %s0 = inlined_call_operand.vmem [shape: bf16[8,32], index: 0, kind: input, shape index: {}]
  %s1 = inlined_call_operand.hbm [shape: bf16[32,512], index: 1, kind: input, shape index: {}]
  %s2 = inlined_call_operand.hbm [shape: bf16[3,512,512], index: 2, kind: input, shape index: {}]
  %s3 = inlined_call_operand.hbm [shape: f32[4,512], index: 3, kind: input, shape index: {}]
  %s4 = inlined_call_operand.hbm [shape: bf16[512,128], index: 4, kind: input, shape index: {}]
  %s5 = inlined_call_operand.hbm [shape: f32[1,128], index: 5, kind: input, shape index: {}]
  %s6 = inlined_call_operand.vmem [shape: bf16[8,128], index: 6, kind: output, shape index: {}]
  %s7 = sld [smem:[#allocation0]]
  $region54: #{clf_discriminator_forward.1} parent=0
    _
  %s9 = ssub.s32 1, %s7
  %s10 = scalar_select 0, %s9, %s7
  $region1: #{clf_discriminator_forward.1} parent=0
    #allocation2 [shape = 'u8[32768]{0}', space=vmem, size = 0x8000, scoped, tag = 'input window, operand 1, single buffered']
    #allocation3 [shape = 's32[1]{0}', space=sflag, size = 0x4, scoped, tag = 'scoped memory for clf_discriminator_forward.1']
    #allocation4 [shape = 'u8[1572864]{0}', space=vmem, size = 0x180000, scoped, tag = 'input window, operand 2, single buffered']
    #allocation5 [shape = 's32[1]{0}', space=sflag, size = 0x4, scoped, tag = 'scoped memory for clf_discriminator_forward.1']
    #allocation6 [shape = 'u8[8192]{0}', space=vmem, size = 0x2000, scoped, tag = 'input window, operand 3, single buffered']
    #allocation7 [shape = 'u8[131072]{0}', space=vmem, size = 0x20000, scoped, tag = 'input window, operand 4, single buffered']
    #allocation8 [shape = 's32[1]{0}', space=sflag, size = 0x4, scoped, tag = 'scoped memory for clf_discriminator_forward.1']
    #allocation9 [shape = 'u8[512]{0}', space=vmem, size = 0x400, scoped, tag = 'input window, operand 5, single buffered']
    %11 = vsyncpa [#allocation3], 0
    %12 = vsyncpa [#allocation5], 0
    %13 = vsyncpa [#allocation8], 0
    // Predicated region
    $region2: #{clf_discriminator_forward.1} parent=1 // pred_check
      _
    $region3: #{clf_discriminator_forward.1} parent=1 // pred_check_branch
      %15 = sbr.rel (0) target = $region5
    $region4: #{clf_discriminator_forward.1} parent=1 // pred_region
      _
    $region5: #{clf_discriminator_forward.1} parent=1 // pred_fallthru
      _
    // Predicated region
    $region6: #{clf_discriminator_forward.1} parent=1 // pred_check
      _
    $region7: #{clf_discriminator_forward.1} parent=1 // pred_check_branch
      %17 = sbr.rel (0) target = $region9
    $region8: #{clf_discriminator_forward.1} parent=1 // pred_region
      %s19 = ssub.s32 1024, 1024
      %20 = vsyncadd [#allocation3], %s19
      %s21 = sshll.u32 [#allocation2], 4
      %s22 = int_to_ptr.vmem [resolvable:$true] %s21
      %27 = dma.hbm_to_vmem [thread:$0]  %s1, 1024, %s22, [#allocation3], 256, 256, 16
    $region9: #{clf_discriminator_forward.1} parent=1 // pred_fallthru
      _
    // Predicated region
    $region10: #{clf_discriminator_forward.1} parent=1 // pred_check
      _
    $region11: #{clf_discriminator_forward.1} parent=1 // pred_check_branch
      %29 = sbr.rel (0) target = $region13
    $region12: #{clf_discriminator_forward.1} parent=1 // pred_region
      %s31 = ssub.s32 49152, 49152
      %32 = vsyncadd [#allocation5], %s31
      %s33 = sshll.u32 [#allocation4], 4
      %s34 = int_to_ptr.vmem [resolvable:$true] %s33
      %39 = dma.hbm_to_vmem [thread:$0]  %s2, 49152, %s34, [#allocation5], 256, 256, 16
    $region13: #{clf_discriminator_forward.1} parent=1 // pred_fallthru
      _
    // Predicated region
    $region14: #{clf_discriminator_forward.1} parent=1 // pred_check
      _
    $region15: #{clf_discriminator_forward.1} parent=1 // pred_check_branch
      %41 = sbr.rel (0) target = $region17
    $region16: #{clf_discriminator_forward.1} parent=1 // pred_region
      %s43 = ssub.s32 256, 256
      %44 = vsyncadd [#allocation5], %s43
      %s46 = sshll.u32 [#allocation6], 4
      %s47 = int_to_ptr.vmem [resolvable:$true] %s46
      %49 = dma.hbm_to_vmem [thread:$0]  %s3, 256, %s47, [#allocation5]
    $region17: #{clf_discriminator_forward.1} parent=1 // pred_fallthru
      _
    // Predicated region
    $region18: #{clf_discriminator_forward.1} parent=1 // pred_check
      _
    $region19: #{clf_discriminator_forward.1} parent=1 // pred_check_branch
      %51 = sbr.rel (0) target = $region21
    $region20: #{clf_discriminator_forward.1} parent=1 // pred_region
      %s53 = ssub.s32 4096, 4096
      %54 = vsyncadd [#allocation8], %s53
      %s55 = sshll.u32 [#allocation7], 4
      %s56 = int_to_ptr.vmem [resolvable:$true] %s55
      %61 = dma.hbm_to_vmem [thread:$0]  %s4, 4096, %s56, [#allocation8], 64, 64, 4
    $region21: #{clf_discriminator_forward.1} parent=1 // pred_fallthru
      _
    // Predicated region
    $region22: #{clf_discriminator_forward.1} parent=1 // pred_check
      _
    $region23: #{clf_discriminator_forward.1} parent=1 // pred_check_branch
      %63 = sbr.rel (0) target = $region25
    $region24: #{clf_discriminator_forward.1} parent=1 // pred_region
      %s65 = ssub.s32 16, 16
      %66 = vsyncadd [#allocation8], %s65
      %s68 = sshll.u32 [#allocation9], 4
      %s69 = int_to_ptr.vmem [resolvable:$true] %s68
      %71 = dma.hbm_to_vmem [thread:$0]  %s5, 16, %s69, [#allocation8]
    $region25: #{clf_discriminator_forward.1} parent=1 // pred_fallthru
      _
    // Predicated region
    $region26: #{clf_discriminator_forward.1} parent=1 // pred_check
      _
    $region27: #{clf_discriminator_forward.1} parent=1 // pred_check_branch
      %73 = sbr.rel (0) target = $region29
    $region28: #{clf_discriminator_forward.1} parent=1 // pred_region
      %74 = dma.done [#allocation3], 1024
    $region29: #{clf_discriminator_forward.1} parent=1 // pred_fallthru
      _
    // Predicated region
    $region30: #{clf_discriminator_forward.1} parent=1 // pred_check
      _
    $region31: #{clf_discriminator_forward.1} parent=1 // pred_check_branch
      %76 = sbr.rel (0) target = $region33
    $region32: #{clf_discriminator_forward.1} parent=1 // pred_region
      %77 = dma.done [#allocation5], 49152
    $region33: #{clf_discriminator_forward.1} parent=1 // pred_fallthru
      _
    // Predicated region
    $region34: #{clf_discriminator_forward.1} parent=1 // pred_check
      _
    $region35: #{clf_discriminator_forward.1} parent=1 // pred_check_branch
      %79 = sbr.rel (0) target = $region37
    $region36: #{clf_discriminator_forward.1} parent=1 // pred_region
      %80 = dma.done [#allocation5], 256
    $region37: #{clf_discriminator_forward.1} parent=1 // pred_fallthru
      _
    // Predicated region
    $region38: #{clf_discriminator_forward.1} parent=1 // pred_check
      _
    $region39: #{clf_discriminator_forward.1} parent=1 // pred_check_branch
      %82 = sbr.rel (0) target = $region41
    $region40: #{clf_discriminator_forward.1} parent=1 // pred_region
      %83 = dma.done [#allocation8], 4096
    $region41: #{clf_discriminator_forward.1} parent=1 // pred_fallthru
      _
    // Predicated region
    $region42: #{clf_discriminator_forward.1} parent=1 // pred_check
      _
    $region43: #{clf_discriminator_forward.1} parent=1 // pred_check_branch
      %85 = sbr.rel (0) target = $region45
    $region44: #{clf_discriminator_forward.1} parent=1 // pred_region
      %86 = dma.done [#allocation8], 16
    $region45: #{clf_discriminator_forward.1} parent=1 // pred_fallthru
      _
    %v88 = vld [vmem:[%s0] sm:$0xf]
    %v89 = vld [vmem:[#allocation2] sm:$0xff]
    %v90 = vld [vmem:[#allocation2 + $0x8] sm:$0xff]
    %v91 = vld [vmem:[#allocation2 + $0x10] sm:$0xff]
    %v92 = vld [vmem:[#allocation2 + $0x18] sm:$0xff]
    %v93 = vld [vmem:[#allocation2 + $0x20] sm:$0xff]
    %v94 = vld [vmem:[#allocation2 + $0x28] sm:$0xff]
    %v95 = vld [vmem:[#allocation2 + $0x30] sm:$0xff]
    %v96 = vld [vmem:[#allocation2 + $0x38] sm:$0xff]
    %v97 = vld [vmem:[#allocation6] ss:$4 sm:$0xf]
    %v99 = vlaneseq
    %v100 = vshrl.u32 %v99, 7
    %v101 = vsub.s32 0, %v100
    %v102 = vrot.slane %v97, %v101
    %v103 = vlaneseq
    %v104 = vshrl.u32 %v103, 7
    %v105 = vsub.s32 1, %v104
    %v106 = vrot.slane %v97, %v105
    %v107 = vlaneseq
    %v108 = vshrl.u32 %v107, 7
    %v109 = vsub.s32 2, %v108
    %v110 = vrot.slane %v97, %v109
    %v111 = vlaneseq
    %v112 = vshrl.u32 %v111, 7
    %v113 = vsub.s32 3, %v112
    %v114 = vrot.slane %v97, %v113
    %v127 = vunpack.c.l.b16 %v89
    %v128 = vunpack.c.h.b16 %v89
    %v129 = vunpack.c.l.b16 %v90
    %v130 = vunpack.c.h.b16 %v90
    %v131 = vunpack.c.l.b16 %v91
    %v132 = vunpack.c.h.b16 %v91
    %v133 = vunpack.c.l.b16 %v92
    %v134 = vunpack.c.h.b16 %v92
    %v135 = vunpack.c.l.b16 %v93
    %v136 = vunpack.c.h.b16 %v93
    %v137 = vunpack.c.l.b16 %v94
    %v138 = vunpack.c.h.b16 %v94
    %v139 = vunpack.c.l.b16 %v95
    %v140 = vunpack.c.h.b16 %v95
    %v141 = vunpack.c.l.b16 %v96
    %v142 = vunpack.c.h.b16 %v96
    %v143 = vpack.c.b16 %v131, %v127
    %v144 = vpack.c.b16 %v132, %v128
    %v145 = vpack.c.b16 %v133, %v129
    %v146 = vpack.c.b16 %v134, %v130
    %v147 = vpack.c.b16 %v139, %v135
    %v148 = vpack.c.b16 %v140, %v136
    %v149 = vpack.c.b16 %v141, %v137
    %v150 = vpack.c.b16 %v142, %v138
    %vm159 = vcmask 261120
    %v161 = vsel %vm159, %v88, 0
    %163 = vmatprep.subr.bf16.mxu0 %v144
    %164 = vmatpush1.bf16.msra.mxu0 %v143
    %165 = vmatprep.subr.bf16.mxu0 %v148
    %166 = vmatpush1.bf16.msra.mxu0 %v147
    %167 = vmatprep.subr.bf16.mxu0 0
    %168 = vmatpush1.bf16.msra.mxu0 0
    %169 = vmatprep.subr.bf16.mxu0 0
    %170 = vmatpush1.bf16.msra.mxu0 0
    %171 = vmatprep.subr.bf16.mxu0 0
    %172 = vmatpush1.bf16.msra.mxu0 0
    %173 = vmatprep.subr.bf16.mxu0 0
    %174 = vmatpush1.bf16.msra.mxu0 0
    %175 = vmatprep.subr.bf16.mxu0 0
    %176 = vmatpush1.bf16.msra.mxu0 0
    %177 = vmatprep.subr.bf16.mxu0 0
    %178 = vmatpush1.bf16.msra.mxu0 0
    %179 = vmatprep.subr.bf16.mxu0 0
    %180 = vmatpush1.bf16.msra.mxu0 0
    %181 = vmatprep.subr.bf16.mxu0 0
    %182 = vmatpush1.bf16.msra.mxu0 0
    %183 = vmatprep.subr.bf16.mxu0 0
    %184 = vmatpush1.bf16.msra.mxu0 0
    %185 = vmatprep.subr.bf16.mxu0 0
    %186 = vmatpush1.bf16.msra.mxu0 0
    %187 = vmatprep.subr.bf16.mxu0 0
    %188 = vmatpush1.bf16.msra.mxu0 0
    %189 = vmatprep.subr.bf16.mxu0 0
    %190 = vmatpush1.bf16.msra.mxu0 0
    %191 = vmatprep.subr.bf16.mxu0 0
    %192 = vmatpush1.bf16.msra.mxu0 0
    %193 = vmatprep.subr.bf16.mxu0 0
    %194 = vmatpush1.bf16.msra.mxu0 0
    %195 = vmatprep.mubr.bf16.mxu0 0
    %196 = vmatmul.mubr.bf16.gmra.mrb[0].mxu0 %v161
    %v197 = vpop.f32.mrb[0].mxu0
    %v198 = vadd.f32 %v102, %v197
    %v199 = vpop.f32.mrb[0].mxu0
    %v200 = vadd.f32 %v106, %v199
    %v201 = vpop.f32.mrb[0].mxu0
    %v202 = vpop.f32.mrb[0].mxu0
    %203 = vdwg.mxu0
    %204 = vmatprep.subr.bf16.mxu0 %v146
    %205 = vmatpush1.bf16.msra.mxu0 %v145
    %206 = vmatprep.subr.bf16.mxu0 %v150
    %207 = vmatpush1.bf16.msra.mxu0 %v149
    %208 = vmatprep.subr.bf16.mxu0 0
    %209 = vmatpush1.bf16.msra.mxu0 0
    %210 = vmatprep.subr.bf16.mxu0 0
    %211 = vmatpush1.bf16.msra.mxu0 0
    %212 = vmatprep.subr.bf16.mxu0 0
    %213 = vmatpush1.bf16.msra.mxu0 0
    %214 = vmatprep.subr.bf16.mxu0 0
    %215 = vmatpush1.bf16.msra.mxu0 0
    %216 = vmatprep.subr.bf16.mxu0 0
    %217 = vmatpush1.bf16.msra.mxu0 0
    %218 = vmatprep.subr.bf16.mxu0 0
    %219 = vmatpush1.bf16.msra.mxu0 0
    %220 = vmatprep.subr.bf16.mxu0 0
    %221 = vmatpush1.bf16.msra.mxu0 0
    %222 = vmatprep.subr.bf16.mxu0 0
    %223 = vmatpush1.bf16.msra.mxu0 0
    %224 = vmatprep.subr.bf16.mxu0 0
    %225 = vmatpush1.bf16.msra.mxu0 0
    %226 = vmatprep.subr.bf16.mxu0 0
    %227 = vmatpush1.bf16.msra.mxu0 0
    %228 = vmatprep.subr.bf16.mxu0 0
    %229 = vmatpush1.bf16.msra.mxu0 0
    %230 = vmatprep.subr.bf16.mxu0 0
    %231 = vmatpush1.bf16.msra.mxu0 0
    %232 = vmatprep.subr.bf16.mxu0 0
    %233 = vmatpush1.bf16.msra.mxu0 0
    %234 = vmatprep.subr.bf16.mxu0 0
    %235 = vmatpush1.bf16.msra.mxu0 0
    %236 = vmatprep.mubr.bf16.mxu0 0
    %237 = vmatmul.mubr.bf16.gmra.mrb[0].mxu0 %v161
    %v238 = vpop.f32.mrb[0].mxu0
    %v239 = vadd.f32 %v110, %v238
    %v240 = vpop.f32.mrb[0].mxu0
    %v241 = vadd.f32 %v114, %v240
    %v242 = vpop.f32.mrb[0].mxu0
    %v243 = vpop.f32.mrb[0].mxu0
    %244 = vdwg.mxu0
    %v245 = vmax.f32 %v198, 0.0
    %v246 = vmax.f32 %v200, 0.0
    %v247 = vmax.f32 %v239, 0.0
    %v248 = vmax.f32 %v241, 0.0
    %v249 = vpack.c.bf16 %v245, %v245
    %v250 = vpack.c.bf16 %v246, %v246
    %v251 = vpack.c.bf16 %v247, %v247
    %v252 = vpack.c.bf16 %v248, %v248
    %v253 = vld [vmem:[#allocation4] sm:$0xff]
    %v254 = vld [vmem:[#allocation4 + $0x8] sm:$0xff]
    %v255 = vld [vmem:[#allocation4 + $0x10] sm:$0xff]
    %v256 = vld [vmem:[#allocation4 + $0x18] sm:$0xff]
    %v257 = vld [vmem:[#allocation4 + $0x20] sm:$0xff]
    %v258 = vld [vmem:[#allocation4 + $0x28] sm:$0xff]
    %v259 = vld [vmem:[#allocation4 + $0x30] sm:$0xff]
    %v260 = vld [vmem:[#allocation4 + $0x38] sm:$0xff]
    %v261 = vld [vmem:[#allocation4 + $0x40] sm:$0xff]
    %v262 = vld [vmem:[#allocation4 + $0x48] sm:$0xff]
    %v263 = vld [vmem:[#allocation4 + $0x50] sm:$0xff]
    %v264 = vld [vmem:[#allocation4 + $0x58] sm:$0xff]
    %v265 = vld [vmem:[#allocation4 + $0x60] sm:$0xff]
    %v266 = vld [vmem:[#allocation4 + $0x68] sm:$0xff]
    %v267 = vld [vmem:[#allocation4 + $0x70] sm:$0xff]
    %v268 = vld [vmem:[#allocation4 + $0x78] sm:$0xff]
    %v269 = vld [vmem:[#allocation4 + $0x80] sm:$0xff]
    %v270 = vld [vmem:[#allocation4 + $0x88] sm:$0xff]
    %v271 = vld [vmem:[#allocation4 + $0x90] sm:$0xff]
    %v272 = vld [vmem:[#allocation4 + $0x98] sm:$0xff]
    %v273 = vld [vmem:[#allocation4 + $0xa0] sm:$0xff]
    %v274 = vld [vmem:[#allocation4 + $0xa8] sm:$0xff]
    %v275 = vld [vmem:[#allocation4 + $0xb0] sm:$0xff]
    %v276 = vld [vmem:[#allocation4 + $0xb8] sm:$0xff]
    %v277 = vld [vmem:[#allocation4 + $0xc0] sm:$0xff]
    %v278 = vld [vmem:[#allocation4 + $0xc8] sm:$0xff]
    %v279 = vld [vmem:[#allocation4 + $0xd0] sm:$0xff]
    %v280 = vld [vmem:[#allocation4 + $0xd8] sm:$0xff]
    %v281 = vld [vmem:[#allocation4 + $0xe0] sm:$0xff]
    %v282 = vld [vmem:[#allocation4 + $0xe8] sm:$0xff]
    %v283 = vld [vmem:[#allocation4 + $0xf0] sm:$0xff]
    %v284 = vld [vmem:[#allocation4 + $0xf8] sm:$0xff]
    %v285 = vld [vmem:[#allocation4 + $0x100] sm:$0xff]
    %v286 = vld [vmem:[#allocation4 + $0x108] sm:$0xff]
    %v287 = vld [vmem:[#allocation4 + $0x110] sm:$0xff]
    %v288 = vld [vmem:[#allocation4 + $0x118] sm:$0xff]
    %v289 = vld [vmem:[#allocation4 + $0x120] sm:$0xff]
    %v290 = vld [vmem:[#allocation4 + $0x128] sm:$0xff]
    %v291 = vld [vmem:[#allocation4 + $0x130] sm:$0xff]
    %v292 = vld [vmem:[#allocation4 + $0x138] sm:$0xff]
    %v293 = vld [vmem:[#allocation4 + $0x140] sm:$0xff]
    %v294 = vld [vmem:[#allocation4 + $0x148] sm:$0xff]
    %v295 = vld [vmem:[#allocation4 + $0x150] sm:$0xff]
    %v296 = vld [vmem:[#allocation4 + $0x158] sm:$0xff]
    %v297 = vld [vmem:[#allocation4 + $0x160] sm:$0xff]
    %v298 = vld [vmem:[#allocation4 + $0x168] sm:$0xff]
    %v299 = vld [vmem:[#allocation4 + $0x170] sm:$0xff]
    %v300 = vld [vmem:[#allocation4 + $0x178] sm:$0xff]
    %v301 = vld [vmem:[#allocation4 + $0x180] sm:$0xff]
    %v302 = vld [vmem:[#allocation4 + $0x188] sm:$0xff]
    %v303 = vld [vmem:[#allocation4 + $0x190] sm:$0xff]
    %v304 = vld [vmem:[#allocation4 + $0x198] sm:$0xff]
    %v305 = vld [vmem:[#allocation4 + $0x1a0] sm:$0xff]
    %v306 = vld [vmem:[#allocation4 + $0x1a8] sm:$0xff]
    %v307 = vld [vmem:[#allocation4 + $0x1b0] sm:$0xff]
    %v308 = vld [vmem:[#allocation4 + $0x1b8] sm:$0xff]
    %v309 = vld [vmem:[#allocation4 + $0x1c0] sm:$0xff]
    %v310 = vld [vmem:[#allocation4 + $0x1c8] sm:$0xff]
    %v311 = vld [vmem:[#allocation4 + $0x1d0] sm:$0xff]
    %v312 = vld [vmem:[#allocation4 + $0x1d8] sm:$0xff]
    %v313 = vld [vmem:[#allocation4 + $0x1e0] sm:$0xff]
    %v314 = vld [vmem:[#allocation4 + $0x1e8] sm:$0xff]
    %v315 = vld [vmem:[#allocation4 + $0x1f0] sm:$0xff]
    %v316 = vld [vmem:[#allocation4 + $0x1f8] sm:$0xff]
    %v317 = vld [vmem:[#allocation4 + $0x200] sm:$0xff]
    %v318 = vld [vmem:[#allocation4 + $0x208] sm:$0xff]
    %v319 = vld [vmem:[#allocation4 + $0x210] sm:$0xff]
    %v320 = vld [vmem:[#allocation4 + $0x218] sm:$0xff]
    %v321 = vld [vmem:[#allocation4 + $0x220] sm:$0xff]
    %v322 = vld [vmem:[#allocation4 + $0x228] sm:$0xff]
    %v323 = vld [vmem:[#allocation4 + $0x230] sm:$0xff]
    %v324 = vld [vmem:[#allocation4 + $0x238] sm:$0xff]
    %v325 = vld [vmem:[#allocation4 + $0x240] sm:$0xff]
    %v326 = vld [vmem:[#allocation4 + $0x248] sm:$0xff]
    %v327 = vld [vmem:[#allocation4 + $0x250] sm:$0xff]
    %v328 = vld [vmem:[#allocation4 + $0x258] sm:$0xff]
    %v329 = vld [vmem:[#allocation4 + $0x260] sm:$0xff]
    %v330 = vld [vmem:[#allocation4 + $0x268] sm:$0xff]
    %v331 = vld [vmem:[#allocation4 + $0x270] sm:$0xff]
    %v332 = vld [vmem:[#allocation4 + $0x278] sm:$0xff]
    %v333 = vld [vmem:[#allocation4 + $0x280] sm:$0xff]
    %v334 = vld [vmem:[#allocation4 + $0x288] sm:$0xff]
    %v335 = vld [vmem:[#allocation4 + $0x290] sm:$0xff]
    %v336 = vld [vmem:[#allocation4 + $0x298] sm:$0xff]
    %v337 = vld [vmem:[#allocation4 + $0x2a0] sm:$0xff]
    %v338 = vld [vmem:[#allocation4 + $0x2a8] sm:$0xff]
    %v339 = vld [vmem:[#allocation4 + $0x2b0] sm:$0xff]
    %v340 = vld [vmem:[#allocation4 + $0x2b8] sm:$0xff]
    %v341 = vld [vmem:[#allocation4 + $0x2c0] sm:$0xff]
    %v342 = vld [vmem:[#allocation4 + $0x2c8] sm:$0xff]
    %v343 = vld [vmem:[#allocation4 + $0x2d0] sm:$0xff]
    %v344 = vld [vmem:[#allocation4 + $0x2d8] sm:$0xff]
    %v345 = vld [vmem:[#allocation4 + $0x2e0] sm:$0xff]
    %v346 = vld [vmem:[#allocation4 + $0x2e8] sm:$0xff]
    %v347 = vld [vmem:[#allocation4 + $0x2f0] sm:$0xff]
    %v348 = vld [vmem:[#allocation4 + $0x2f8] sm:$0xff]
    %v349 = vld [vmem:[#allocation4 + $0x300] sm:$0xff]
    %v350 = vld [vmem:[#allocation4 + $0x308] sm:$0xff]
    %v351 = vld [vmem:[#allocation4 + $0x310] sm:$0xff]
    %v352 = vld [vmem:[#allocation4 + $0x318] sm:$0xff]
    %v353 = vld [vmem:[#allocation4 + $0x320] sm:$0xff]
    %v354 = vld [vmem:[#allocation4 + $0x328] sm:$0xff]
    %v355 = vld [vmem:[#allocation4 + $0x330] sm:$0xff]
    %v356 = vld [vmem:[#allocation4 + $0x338] sm:$0xff]
    %v357 = vld [vmem:[#allocation4 + $0x340] sm:$0xff]
    %v358 = vld [vmem:[#allocation4 + $0x348] sm:$0xff]
    %v359 = vld [vmem:[#allocation4 + $0x350] sm:$0xff]
    %v360 = vld [vmem:[#allocation4 + $0x358] sm:$0xff]
    %v361 = vld [vmem:[#allocation4 + $0x360] sm:$0xff]
    %v362 = vld [vmem:[#allocation4 + $0x368] sm:$0xff]
    %v363 = vld [vmem:[#allocation4 + $0x370] sm:$0xff]
    %v364 = vld [vmem:[#allocation4 + $0x378] sm:$0xff]
    %v365 = vld [vmem:[#allocation4 + $0x380] sm:$0xff]
    %v366 = vld [vmem:[#allocation4 + $0x388] sm:$0xff]
    %v367 = vld [vmem:[#allocation4 + $0x390] sm:$0xff]
    %v368 = vld [vmem:[#allocation4 + $0x398] sm:$0xff]
    %v369 = vld [vmem:[#allocation4 + $0x3a0] sm:$0xff]
    %v370 = vld [vmem:[#allocation4 + $0x3a8] sm:$0xff]
    %v371 = vld [vmem:[#allocation4 + $0x3b0] sm:$0xff]
    %v372 = vld [vmem:[#allocation4 + $0x3b8] sm:$0xff]
    %v373 = vld [vmem:[#allocation4 + $0x3c0] sm:$0xff]
    %v374 = vld [vmem:[#allocation4 + $0x3c8] sm:$0xff]
    %v375 = vld [vmem:[#allocation4 + $0x3d0] sm:$0xff]
    %v376 = vld [vmem:[#allocation4 + $0x3d8] sm:$0xff]
    %v377 = vld [vmem:[#allocation4 + $0x3e0] sm:$0xff]
    %v378 = vld [vmem:[#allocation4 + $0x3e8] sm:$0xff]
    %v379 = vld [vmem:[#allocation4 + $0x3f0] sm:$0xff]
    %v380 = vld [vmem:[#allocation4 + $0x3f8] sm:$0xff]
    %s381 = scalar_lea.vmem [#allocation6], 1
    %v382 = vld [vmem:[%s381] ss:$4 sm:$0xf]
    %v384 = vlaneseq
    %v385 = vshrl.u32 %v384, 7
    %v386 = vsub.s32 0, %v385
    %v387 = vrot.slane %v382, %v386
    %v388 = vlaneseq
    %v389 = vshrl.u32 %v388, 7
    %v390 = vsub.s32 1, %v389
    %v391 = vrot.slane %v382, %v390
    %v392 = vlaneseq
    %v393 = vshrl.u32 %v392, 7
    %v394 = vsub.s32 2, %v393
    %v395 = vrot.slane %v382, %v394
    %v396 = vlaneseq
    %v397 = vshrl.u32 %v396, 7
    %v398 = vsub.s32 3, %v397
    %v399 = vrot.slane %v382, %v398
    %v532 = vunpack.c.l.b16 %v253
    %v533 = vunpack.c.h.b16 %v253
    %v534 = vunpack.c.l.b16 %v254
    %v535 = vunpack.c.h.b16 %v254
    %v536 = vunpack.c.l.b16 %v255
    %v537 = vunpack.c.h.b16 %v255
    %v538 = vunpack.c.l.b16 %v256
    %v539 = vunpack.c.h.b16 %v256
    %v540 = vunpack.c.l.b16 %v257
    %v541 = vunpack.c.h.b16 %v257
    %v542 = vunpack.c.l.b16 %v258
    %v543 = vunpack.c.h.b16 %v258
    %v544 = vunpack.c.l.b16 %v259
    %v545 = vunpack.c.h.b16 %v259
    %v546 = vunpack.c.l.b16 %v260
    %v547 = vunpack.c.h.b16 %v260
    %v548 = vunpack.c.l.b16 %v261
    %v549 = vunpack.c.h.b16 %v261
    %v550 = vunpack.c.l.b16 %v262
    %v551 = vunpack.c.h.b16 %v262
    %v552 = vunpack.c.l.b16 %v263
    %v553 = vunpack.c.h.b16 %v263
    %v554 = vunpack.c.l.b16 %v264
    %v555 = vunpack.c.h.b16 %v264
    %v556 = vunpack.c.l.b16 %v265
    %v557 = vunpack.c.h.b16 %v265
    %v558 = vunpack.c.l.b16 %v266
    %v559 = vunpack.c.h.b16 %v266
    %v560 = vunpack.c.l.b16 %v267
    %v561 = vunpack.c.h.b16 %v267
    %v562 = vunpack.c.l.b16 %v268
    %v563 = vunpack.c.h.b16 %v268
    %v564 = vunpack.c.l.b16 %v269
    %v565 = vunpack.c.h.b16 %v269
    %v566 = vunpack.c.l.b16 %v270
    %v567 = vunpack.c.h.b16 %v270
    %v568 = vunpack.c.l.b16 %v271
    %v569 = vunpack.c.h.b16 %v271
    %v570 = vunpack.c.l.b16 %v272
    %v571 = vunpack.c.h.b16 %v272
    %v572 = vunpack.c.l.b16 %v273
    %v573 = vunpack.c.h.b16 %v273
    %v574 = vunpack.c.l.b16 %v274
    %v575 = vunpack.c.h.b16 %v274
    %v576 = vunpack.c.l.b16 %v275
    %v577 = vunpack.c.h.b16 %v275
    %v578 = vunpack.c.l.b16 %v276
    %v579 = vunpack.c.h.b16 %v276
    %v580 = vunpack.c.l.b16 %v277
    %v581 = vunpack.c.h.b16 %v277
    %v582 = vunpack.c.l.b16 %v278
    %v583 = vunpack.c.h.b16 %v278
    %v584 = vunpack.c.l.b16 %v279
    %v585 = vunpack.c.h.b16 %v279
    %v586 = vunpack.c.l.b16 %v280
    %v587 = vunpack.c.h.b16 %v280
    %v588 = vunpack.c.l.b16 %v281
    %v589 = vunpack.c.h.b16 %v281
    %v590 = vunpack.c.l.b16 %v282
    %v591 = vunpack.c.h.b16 %v282
    %v592 = vunpack.c.l.b16 %v283
    %v593 = vunpack.c.h.b16 %v283
    %v594 = vunpack.c.l.b16 %v284
    %v595 = vunpack.c.h.b16 %v284
    %v596 = vunpack.c.l.b16 %v285
    %v597 = vunpack.c.h.b16 %v285
    %v598 = vunpack.c.l.b16 %v286
    %v599 = vunpack.c.h.b16 %v286
    %v600 = vunpack.c.l.b16 %v287
    %v601 = vunpack.c.h.b16 %v287
    %v602 = vunpack.c.l.b16 %v288
    %v603 = vunpack.c.h.b16 %v288
    %v604 = vunpack.c.l.b16 %v289
    %v605 = vunpack.c.h.b16 %v289
    %v606 = vunpack.c.l.b16 %v290
    %v607 = vunpack.c.h.b16 %v290
    %v608 = vunpack.c.l.b16 %v291
    %v609 = vunpack.c.h.b16 %v291
    %v610 = vunpack.c.l.b16 %v292
    %v611 = vunpack.c.h.b16 %v292
    %v612 = vunpack.c.l.b16 %v293
    %v613 = vunpack.c.h.b16 %v293
    %v614 = vunpack.c.l.b16 %v294
    %v615 = vunpack.c.h.b16 %v294
    %v616 = vunpack.c.l.b16 %v295
    %v617 = vunpack.c.h.b16 %v295
    %v618 = vunpack.c.l.b16 %v296
    %v619 = vunpack.c.h.b16 %v296
    %v620 = vunpack.c.l.b16 %v297
    %v621 = vunpack.c.h.b16 %v297
    %v622 = vunpack.c.l.b16 %v298
    %v623 = vunpack.c.h.b16 %v298
    %v624 = vunpack.c.l.b16 %v299
    %v625 = vunpack.c.h.b16 %v299
    %v626 = vunpack.c.l.b16 %v300
    %v627 = vunpack.c.h.b16 %v300
    %v628 = vunpack.c.l.b16 %v301
    %v629 = vunpack.c.h.b16 %v301
    %v630 = vunpack.c.l.b16 %v302
    %v631 = vunpack.c.h.b16 %v302
    %v632 = vunpack.c.l.b16 %v303
    %v633 = vunpack.c.h.b16 %v303
    %v634 = vunpack.c.l.b16 %v304
    %v635 = vunpack.c.h.b16 %v304
    %v636 = vunpack.c.l.b16 %v305
    %v637 = vunpack.c.h.b16 %v305
    %v638 = vunpack.c.l.b16 %v306
    %v639 = vunpack.c.h.b16 %v306
    %v640 = vunpack.c.l.b16 %v307
    %v641 = vunpack.c.h.b16 %v307
    %v642 = vunpack.c.l.b16 %v308
    %v643 = vunpack.c.h.b16 %v308
    %v644 = vunpack.c.l.b16 %v309
    %v645 = vunpack.c.h.b16 %v309
    %v646 = vunpack.c.l.b16 %v310
    %v647 = vunpack.c.h.b16 %v310
    %v648 = vunpack.c.l.b16 %v311
    %v649 = vunpack.c.h.b16 %v311
    %v650 = vunpack.c.l.b16 %v312
    %v651 = vunpack.c.h.b16 %v312
    %v652 = vunpack.c.l.b16 %v313
    %v653 = vunpack.c.h.b16 %v313
    %v654 = vunpack.c.l.b16 %v314
    %v655 = vunpack.c.h.b16 %v314
    %v656 = vunpack.c.l.b16 %v315
    %v657 = vunpack.c.h.b16 %v315
    %v658 = vunpack.c.l.b16 %v316
    %v659 = vunpack.c.h.b16 %v316
    %v660 = vunpack.c.l.b16 %v317
    %v661 = vunpack.c.h.b16 %v317
    %v662 = vunpack.c.l.b16 %v318
    %v663 = vunpack.c.h.b16 %v318
    %v664 = vunpack.c.l.b16 %v319
    %v665 = vunpack.c.h.b16 %v319
    %v666 = vunpack.c.l.b16 %v320
    %v667 = vunpack.c.h.b16 %v320
    %v668 = vunpack.c.l.b16 %v321
    %v669 = vunpack.c.h.b16 %v321
    %v670 = vunpack.c.l.b16 %v322
    %v671 = vunpack.c.h.b16 %v322
    %v672 = vunpack.c.l.b16 %v323
    %v673 = vunpack.c.h.b16 %v323
    %v674 = vunpack.c.l.b16 %v324
    %v675 = vunpack.c.h.b16 %v324
    %v676 = vunpack.c.l.b16 %v325
    %v677 = vunpack.c.h.b16 %v325
    %v678 = vunpack.c.l.b16 %v326
    %v679 = vunpack.c.h.b16 %v326
    %v680 = vunpack.c.l.b16 %v327
    %v681 = vunpack.c.h.b16 %v327
    %v682 = vunpack.c.l.b16 %v328
    %v683 = vunpack.c.h.b16 %v328
    %v684 = vunpack.c.l.b16 %v329
    %v685 = vunpack.c.h.b16 %v329
    %v686 = vunpack.c.l.b16 %v330
    %v687 = vunpack.c.h.b16 %v330
    %v688 = vunpack.c.l.b16 %v331
    %v689 = vunpack.c.h.b16 %v331
    %v690 = vunpack.c.l.b16 %v332
    %v691 = vunpack.c.h.b16 %v332
    %v692 = vunpack.c.l.b16 %v333
    %v693 = vunpack.c.h.b16 %v333
    %v694 = vunpack.c.l.b16 %v334
    %v695 = vunpack.c.h.b16 %v334
    %v696 = vunpack.c.l.b16 %v335
    %v697 = vunpack.c.h.b16 %v335
    %v698 = vunpack.c.l.b16 %v336
    %v699 = vunpack.c.h.b16 %v336
    %v700 = vunpack.c.l.b16 %v337
    %v701 = vunpack.c.h.b16 %v337
    %v702 = vunpack.c.l.b16 %v338
    %v703 = vunpack.c.h.b16 %v338
    %v704 = vunpack.c.l.b16 %v339
    %v705 = vunpack.c.h.b16 %v339
    %v706 = vunpack.c.l.b16 %v340
    %v707 = vunpack.c.h.b16 %v340
    %v708 = vunpack.c.l.b16 %v341
    %v709 = vunpack.c.h.b16 %v341
    %v710 = vunpack.c.l.b16 %v342
    %v711 = vunpack.c.h.b16 %v342
    %v712 = vunpack.c.l.b16 %v343
    %v713 = vunpack.c.h.b16 %v343
    %v714 = vunpack.c.l.b16 %v344
    %v715 = vunpack.c.h.b16 %v344
    %v716 = vunpack.c.l.b16 %v345
    %v717 = vunpack.c.h.b16 %v345
    %v718 = vunpack.c.l.b16 %v346
    %v719 = vunpack.c.h.b16 %v346
    %v720 = vunpack.c.l.b16 %v347
    %v721 = vunpack.c.h.b16 %v347
    %v722 = vunpack.c.l.b16 %v348
    %v723 = vunpack.c.h.b16 %v348
    %v724 = vunpack.c.l.b16 %v349
    %v725 = vunpack.c.h.b16 %v349
    %v726 = vunpack.c.l.b16 %v350
    %v727 = vunpack.c.h.b16 %v350
    %v728 = vunpack.c.l.b16 %v351
    %v729 = vunpack.c.h.b16 %v351
    %v730 = vunpack.c.l.b16 %v352
    %v731 = vunpack.c.h.b16 %v352
    %v732 = vunpack.c.l.b16 %v353
    %v733 = vunpack.c.h.b16 %v353
    %v734 = vunpack.c.l.b16 %v354
    %v735 = vunpack.c.h.b16 %v354
    %v736 = vunpack.c.l.b16 %v355
    %v737 = vunpack.c.h.b16 %v355
    %v738 = vunpack.c.l.b16 %v356
    %v739 = vunpack.c.h.b16 %v356
    %v740 = vunpack.c.l.b16 %v357
    %v741 = vunpack.c.h.b16 %v357
    %v742 = vunpack.c.l.b16 %v358
    %v743 = vunpack.c.h.b16 %v358
    %v744 = vunpack.c.l.b16 %v359
    %v745 = vunpack.c.h.b16 %v359
    %v746 = vunpack.c.l.b16 %v360
    %v747 = vunpack.c.h.b16 %v360
    %v748 = vunpack.c.l.b16 %v361
    %v749 = vunpack.c.h.b16 %v361
    %v750 = vunpack.c.l.b16 %v362
    %v751 = vunpack.c.h.b16 %v362
    %v752 = vunpack.c.l.b16 %v363
    %v753 = vunpack.c.h.b16 %v363
    %v754 = vunpack.c.l.b16 %v364
    %v755 = vunpack.c.h.b16 %v364
    %v756 = vunpack.c.l.b16 %v365
    %v757 = vunpack.c.h.b16 %v365
    %v758 = vunpack.c.l.b16 %v366
    %v759 = vunpack.c.h.b16 %v366
    %v760 = vunpack.c.l.b16 %v367
    %v761 = vunpack.c.h.b16 %v367
    %v762 = vunpack.c.l.b16 %v368
    %v763 = vunpack.c.h.b16 %v368
    %v764 = vunpack.c.l.b16 %v369
    %v765 = vunpack.c.h.b16 %v369
    %v766 = vunpack.c.l.b16 %v370
    %v767 = vunpack.c.h.b16 %v370
    %v768 = vunpack.c.l.b16 %v371
    %v769 = vunpack.c.h.b16 %v371
    %v770 = vunpack.c.l.b16 %v372
    %v771 = vunpack.c.h.b16 %v372
    %v772 = vunpack.c.l.b16 %v373
    %v773 = vunpack.c.h.b16 %v373
    %v774 = vunpack.c.l.b16 %v374
    %v775 = vunpack.c.h.b16 %v374
    %v776 = vunpack.c.l.b16 %v375
    %v777 = vunpack.c.h.b16 %v375
    %v778 = vunpack.c.l.b16 %v376
    %v779 = vunpack.c.h.b16 %v376
    %v780 = vunpack.c.l.b16 %v377
    %v781 = vunpack.c.h.b16 %v377
    %v782 = vunpack.c.l.b16 %v378
    %v783 = vunpack.c.h.b16 %v378
    %v784 = vunpack.c.l.b16 %v379
    %v785 = vunpack.c.h.b16 %v379
    %v786 = vunpack.c.l.b16 %v380
    %v787 = vunpack.c.h.b16 %v380
    %v788 = vpack.c.b16 %v536, %v532
    %v789 = vpack.c.b16 %v537, %v533
    %v790 = vpack.c.b16 %v538, %v534
    %v791 = vpack.c.b16 %v539, %v535
    %v792 = vpack.c.b16 %v544, %v540
    %v793 = vpack.c.b16 %v545, %v541
    %v794 = vpack.c.b16 %v546, %v542
    %v795 = vpack.c.b16 %v547, %v543
    %v796 = vpack.c.b16 %v552, %v548
    %v797 = vpack.c.b16 %v553, %v549
    %v798 = vpack.c.b16 %v554, %v550
    %v799 = vpack.c.b16 %v555, %v551
    %v800 = vpack.c.b16 %v560, %v556
    %v801 = vpack.c.b16 %v561, %v557
    %v802 = vpack.c.b16 %v562, %v558
    %v803 = vpack.c.b16 %v563, %v559
    %v804 = vpack.c.b16 %v568, %v564
    %v805 = vpack.c.b16 %v569, %v565
    %v806 = vpack.c.b16 %v570, %v566
    %v807 = vpack.c.b16 %v571, %v567
    %v808 = vpack.c.b16 %v576, %v572
    %v809 = vpack.c.b16 %v577, %v573
    %v810 = vpack.c.b16 %v578, %v574
    %v811 = vpack.c.b16 %v579, %v575
    %v812 = vpack.c.b16 %v584, %v580
    %v813 = vpack.c.b16 %v585, %v581
    %v814 = vpack.c.b16 %v586, %v582
    %v815 = vpack.c.b16 %v587, %v583
    %v816 = vpack.c.b16 %v592, %v588
    %v817 = vpack.c.b16 %v593, %v589
    %v818 = vpack.c.b16 %v594, %v590
    %v819 = vpack.c.b16 %v595, %v591
    %v820 = vpack.c.b16 %v600, %v596
    %v821 = vpack.c.b16 %v601, %v597
    %v822 = vpack.c.b16 %v602, %v598
    %v823 = vpack.c.b16 %v603, %v599
    %v824 = vpack.c.b16 %v608, %v604
    %v825 = vpack.c.b16 %v609, %v605
    %v826 = vpack.c.b16 %v610, %v606
    %v827 = vpack.c.b16 %v611, %v607
    %v828 = vpack.c.b16 %v616, %v612
    %v829 = vpack.c.b16 %v617, %v613
    %v830 = vpack.c.b16 %v618, %v614
    %v831 = vpack.c.b16 %v619, %v615
    %v832 = vpack.c.b16 %v624, %v620
    %v833 = vpack.c.b16 %v625, %v621
    %v834 = vpack.c.b16 %v626, %v622
    %v835 = vpack.c.b16 %v627, %v623
    %v836 = vpack.c.b16 %v632, %v628
    %v837 = vpack.c.b16 %v633, %v629
    %v838 = vpack.c.b16 %v634, %v630
    %v839 = vpack.c.b16 %v635, %v631
    %v840 = vpack.c.b16 %v640, %v636
    %v841 = vpack.c.b16 %v641, %v637
    %v842 = vpack.c.b16 %v642, %v638
    %v843 = vpack.c.b16 %v643, %v639
    %v844 = vpack.c.b16 %v648, %v644
    %v845 = vpack.c.b16 %v649, %v645
    %v846 = vpack.c.b16 %v650, %v646
    %v847 = vpack.c.b16 %v651, %v647
    %v848 = vpack.c.b16 %v656, %v652
    %v849 = vpack.c.b16 %v657, %v653
    %v850 = vpack.c.b16 %v658, %v654
    %v851 = vpack.c.b16 %v659, %v655
    %v852 = vpack.c.b16 %v664, %v660
    %v853 = vpack.c.b16 %v665, %v661
    %v854 = vpack.c.b16 %v666, %v662
    %v855 = vpack.c.b16 %v667, %v663
    %v856 = vpack.c.b16 %v672, %v668
    %v857 = vpack.c.b16 %v673, %v669
    %v858 = vpack.c.b16 %v674, %v670
    %v859 = vpack.c.b16 %v675, %v671
    %v860 = vpack.c.b16 %v680, %v676
    %v861 = vpack.c.b16 %v681, %v677
    %v862 = vpack.c.b16 %v682, %v678
    %v863 = vpack.c.b16 %v683, %v679
    %v864 = vpack.c.b16 %v688, %v684
    %v865 = vpack.c.b16 %v689, %v685
    %v866 = vpack.c.b16 %v690, %v686
    %v867 = vpack.c.b16 %v691, %v687
    %v868 = vpack.c.b16 %v696, %v692
    %v869 = vpack.c.b16 %v697, %v693
    %v870 = vpack.c.b16 %v698, %v694
    %v871 = vpack.c.b16 %v699, %v695
    %v872 = vpack.c.b16 %v704, %v700
    %v873 = vpack.c.b16 %v705, %v701
    %v874 = vpack.c.b16 %v706, %v702
    %v875 = vpack.c.b16 %v707, %v703
    %v876 = vpack.c.b16 %v712, %v708
    %v877 = vpack.c.b16 %v713, %v709
    %v878 = vpack.c.b16 %v714, %v710
    %v879 = vpack.c.b16 %v715, %v711
    %v880 = vpack.c.b16 %v720, %v716
    %v881 = vpack.c.b16 %v721, %v717
    %v882 = vpack.c.b16 %v722, %v718
    %v883 = vpack.c.b16 %v723, %v719
    %v884 = vpack.c.b16 %v728, %v724
    %v885 = vpack.c.b16 %v729, %v725
    %v886 = vpack.c.b16 %v730, %v726
    %v887 = vpack.c.b16 %v731, %v727
    %v888 = vpack.c.b16 %v736, %v732
    %v889 = vpack.c.b16 %v737, %v733
    %v890 = vpack.c.b16 %v738, %v734
    %v891 = vpack.c.b16 %v739, %v735
    %v892 = vpack.c.b16 %v744, %v740
    %v893 = vpack.c.b16 %v745, %v741
    %v894 = vpack.c.b16 %v746, %v742
    %v895 = vpack.c.b16 %v747, %v743
    %v896 = vpack.c.b16 %v752, %v748
    %v897 = vpack.c.b16 %v753, %v749
    %v898 = vpack.c.b16 %v754, %v750
    %v899 = vpack.c.b16 %v755, %v751
    %v900 = vpack.c.b16 %v760, %v756
    %v901 = vpack.c.b16 %v761, %v757
    %v902 = vpack.c.b16 %v762, %v758
    %v903 = vpack.c.b16 %v763, %v759
    %v904 = vpack.c.b16 %v768, %v764
    %v905 = vpack.c.b16 %v769, %v765
    %v906 = vpack.c.b16 %v770, %v766
    %v907 = vpack.c.b16 %v771, %v767
    %v908 = vpack.c.b16 %v776, %v772
    %v909 = vpack.c.b16 %v777, %v773
    %v910 = vpack.c.b16 %v778, %v774
    %v911 = vpack.c.b16 %v779, %v775
    %v912 = vpack.c.b16 %v784, %v780
    %v913 = vpack.c.b16 %v785, %v781
    %v914 = vpack.c.b16 %v786, %v782
    %v915 = vpack.c.b16 %v787, %v783
    %1044 = vmatprep.subr.bf16.mxu0 %v789
    %1045 = vmatpush1.bf16.msra.mxu0 %v788
    %1046 = vmatprep.subr.bf16.mxu0 %v793
    %1047 = vmatpush1.bf16.msra.mxu0 %v792
    %1048 = vmatprep.subr.bf16.mxu0 %v797
    %1049 = vmatpush1.bf16.msra.mxu0 %v796
    %1050 = vmatprep.subr.bf16.mxu0 %v801
    %1051 = vmatpush1.bf16.msra.mxu0 %v800
    %1052 = vmatprep.subr.bf16.mxu0 %v805
    %1053 = vmatpush1.bf16.msra.mxu0 %v804
    %1054 = vmatprep.subr.bf16.mxu0 %v809
    %1055 = vmatpush1.bf16.msra.mxu0 %v808
    %1056 = vmatprep.subr.bf16.mxu0 %v813
    %1057 = vmatpush1.bf16.msra.mxu0 %v812
    %1058 = vmatprep.subr.bf16.mxu0 %v817
    %1059 = vmatpush1.bf16.msra.mxu0 %v816
    %1060 = vmatprep.subr.bf16.mxu0 %v821
    %1061 = vmatpush1.bf16.msra.mxu0 %v820
    %1062 = vmatprep.subr.bf16.mxu0 %v825
    %1063 = vmatpush1.bf16.msra.mxu0 %v824
    %1064 = vmatprep.subr.bf16.mxu0 %v829
    %1065 = vmatpush1.bf16.msra.mxu0 %v828
    %1066 = vmatprep.subr.bf16.mxu0 %v833
    %1067 = vmatpush1.bf16.msra.mxu0 %v832
    %1068 = vmatprep.subr.bf16.mxu0 %v837
    %1069 = vmatpush1.bf16.msra.mxu0 %v836
    %1070 = vmatprep.subr.bf16.mxu0 %v841
    %1071 = vmatpush1.bf16.msra.mxu0 %v840
    %1072 = vmatprep.subr.bf16.mxu0 %v845
    %1073 = vmatpush1.bf16.msra.mxu0 %v844
    %1074 = vmatprep.subr.bf16.mxu0 %v849
    %1075 = vmatpush1.bf16.msra.mxu0 %v848
    %1076 = vmatprep.mubr.bf16.mxu0 %v250
    %1077 = vmatmul.mubr.bf16.gmra.mrb[0].mxu0 %v249
    %v1078 = vpop.f32.mrb[0].mxu0
    %v1079 = vadd.f32 %v387, %v1078
    %v1080 = vpop.f32.mrb[0].mxu0
    %v1081 = vadd.f32 %v391, %v1080
    %v1082 = vpop.f32.mrb[0].mxu0
    %v1083 = vpop.f32.mrb[0].mxu0
    %1084 = vdwg.mxu0
    %1085 = vmatprep.subr.bf16.mxu0 %v853
    %1086 = vmatpush1.bf16.msra.mxu0 %v852
    %1087 = vmatprep.subr.bf16.mxu0 %v857
    %1088 = vmatpush1.bf16.msra.mxu0 %v856
    %1089 = vmatprep.subr.bf16.mxu0 %v861
    %1090 = vmatpush1.bf16.msra.mxu0 %v860
    %1091 = vmatprep.subr.bf16.mxu0 %v865
    %1092 = vmatpush1.bf16.msra.mxu0 %v864
    %1093 = vmatprep.subr.bf16.mxu0 %v869
    %1094 = vmatpush1.bf16.msra.mxu0 %v868
    %1095 = vmatprep.subr.bf16.mxu0 %v873
    %1096 = vmatpush1.bf16.msra.mxu0 %v872
    %1097 = vmatprep.subr.bf16.mxu0 %v877
    %1098 = vmatpush1.bf16.msra.mxu0 %v876
    %1099 = vmatprep.subr.bf16.mxu0 %v881
    %1100 = vmatpush1.bf16.msra.mxu0 %v880
    %1101 = vmatprep.subr.bf16.mxu0 %v885
    %1102 = vmatpush1.bf16.msra.mxu0 %v884
    %1103 = vmatprep.subr.bf16.mxu0 %v889
    %1104 = vmatpush1.bf16.msra.mxu0 %v888
    %1105 = vmatprep.subr.bf16.mxu0 %v893
    %1106 = vmatpush1.bf16.msra.mxu0 %v892
    %1107 = vmatprep.subr.bf16.mxu0 %v897
    %1108 = vmatpush1.bf16.msra.mxu0 %v896
    %1109 = vmatprep.subr.bf16.mxu0 %v901
    %1110 = vmatpush1.bf16.msra.mxu0 %v900
    %1111 = vmatprep.subr.bf16.mxu0 %v905
    %1112 = vmatpush1.bf16.msra.mxu0 %v904
    %1113 = vmatprep.subr.bf16.mxu0 %v909
    %1114 = vmatpush1.bf16.msra.mxu0 %v908
    %1115 = vmatprep.subr.bf16.mxu0 %v913
    %1116 = vmatpush1.bf16.msra.mxu0 %v912
    %1117 = vmatprep.mubr.bf16.mxu0 %v252
    %1118 = vmatmul.mubr.bf16.gmra.mrb[0].mxu0 %v251
    %v1119 = vpop.f32.mrb[0].mxu0
    %v1120 = vadd.f32 %v1079, %v1119
    %v1121 = vpop.f32.mrb[0].mxu0
    %v1122 = vadd.f32 %v1081, %v1121
    %v1123 = vpop.f32.mrb[0].mxu0
    %v1124 = vpop.f32.mrb[0].mxu0
    %1125 = vdwg.mxu0
    %1126 = vmatprep.subr.bf16.mxu0 %v791
    %1127 = vmatpush1.bf16.msra.mxu0 %v790
    %1128 = vmatprep.subr.bf16.mxu0 %v795
    %1129 = vmatpush1.bf16.msra.mxu0 %v794
    %1130 = vmatprep.subr.bf16.mxu0 %v799
    %1131 = vmatpush1.bf16.msra.mxu0 %v798
    %1132 = vmatprep.subr.bf16.mxu0 %v803
    %1133 = vmatpush1.bf16.msra.mxu0 %v802
    %1134 = vmatprep.subr.bf16.mxu0 %v807
    %1135 = vmatpush1.bf16.msra.mxu0 %v806
    %1136 = vmatprep.subr.bf16.mxu0 %v811
    %1137 = vmatpush1.bf16.msra.mxu0 %v810
    %1138 = vmatprep.subr.bf16.mxu0 %v815
    %1139 = vmatpush1.bf16.msra.mxu0 %v814
    %1140 = vmatprep.subr.bf16.mxu0 %v819
    %1141 = vmatpush1.bf16.msra.mxu0 %v818
    %1142 = vmatprep.subr.bf16.mxu0 %v823
    %1143 = vmatpush1.bf16.msra.mxu0 %v822
    %1144 = vmatprep.subr.bf16.mxu0 %v827
    %1145 = vmatpush1.bf16.msra.mxu0 %v826
    %1146 = vmatprep.subr.bf16.mxu0 %v831
    %1147 = vmatpush1.bf16.msra.mxu0 %v830
    %1148 = vmatprep.subr.bf16.mxu0 %v835
    %1149 = vmatpush1.bf16.msra.mxu0 %v834
    %1150 = vmatprep.subr.bf16.mxu0 %v839
    %1151 = vmatpush1.bf16.msra.mxu0 %v838
    %1152 = vmatprep.subr.bf16.mxu0 %v843
    %1153 = vmatpush1.bf16.msra.mxu0 %v842
    %1154 = vmatprep.subr.bf16.mxu0 %v847
    %1155 = vmatpush1.bf16.msra.mxu0 %v846
    %1156 = vmatprep.subr.bf16.mxu0 %v851
    %1157 = vmatpush1.bf16.msra.mxu0 %v850
    %1158 = vmatprep.mubr.bf16.mxu0 %v250
    %1159 = vmatmul.mubr.bf16.gmra.mrb[0].mxu0 %v249
    %v1160 = vpop.f32.mrb[0].mxu0
    %v1161 = vadd.f32 %v395, %v1160
    %v1162 = vpop.f32.mrb[0].mxu0
    %v1163 = vadd.f32 %v399, %v1162
    %v1164 = vpop.f32.mrb[0].mxu0
    %v1165 = vpop.f32.mrb[0].mxu0
    %1166 = vdwg.mxu0
    %1167 = vmatprep.subr.bf16.mxu0 %v855
    %1168 = vmatpush1.bf16.msra.mxu0 %v854
    %1169 = vmatprep.subr.bf16.mxu0 %v859
    %1170 = vmatpush1.bf16.msra.mxu0 %v858
    %1171 = vmatprep.subr.bf16.mxu0 %v863
    %1172 = vmatpush1.bf16.msra.mxu0 %v862
    %1173 = vmatprep.subr.bf16.mxu0 %v867
    %1174 = vmatpush1.bf16.msra.mxu0 %v866
    %1175 = vmatprep.subr.bf16.mxu0 %v871
    %1176 = vmatpush1.bf16.msra.mxu0 %v870
    %1177 = vmatprep.subr.bf16.mxu0 %v875
    %1178 = vmatpush1.bf16.msra.mxu0 %v874
    %1179 = vmatprep.subr.bf16.mxu0 %v879
    %1180 = vmatpush1.bf16.msra.mxu0 %v878
    %1181 = vmatprep.subr.bf16.mxu0 %v883
    %1182 = vmatpush1.bf16.msra.mxu0 %v882
    %1183 = vmatprep.subr.bf16.mxu0 %v887
    %1184 = vmatpush1.bf16.msra.mxu0 %v886
    %1185 = vmatprep.subr.bf16.mxu0 %v891
    %1186 = vmatpush1.bf16.msra.mxu0 %v890
    %1187 = vmatprep.subr.bf16.mxu0 %v895
    %1188 = vmatpush1.bf16.msra.mxu0 %v894
    %1189 = vmatprep.subr.bf16.mxu0 %v899
    %1190 = vmatpush1.bf16.msra.mxu0 %v898
    %1191 = vmatprep.subr.bf16.mxu0 %v903
    %1192 = vmatpush1.bf16.msra.mxu0 %v902
    %1193 = vmatprep.subr.bf16.mxu0 %v907
    %1194 = vmatpush1.bf16.msra.mxu0 %v906
    %1195 = vmatprep.subr.bf16.mxu0 %v911
    %1196 = vmatpush1.bf16.msra.mxu0 %v910
    %1197 = vmatprep.subr.bf16.mxu0 %v915
    %1198 = vmatpush1.bf16.msra.mxu0 %v914
    %1199 = vmatprep.mubr.bf16.mxu0 %v252
    %1200 = vmatmul.mubr.bf16.gmra.mrb[0].mxu0 %v251
    %v1201 = vpop.f32.mrb[0].mxu0
    %v1202 = vadd.f32 %v1161, %v1201
    %v1203 = vpop.f32.mrb[0].mxu0
    %v1204 = vadd.f32 %v1163, %v1203
    %v1205 = vpop.f32.mrb[0].mxu0
    %v1206 = vpop.f32.mrb[0].mxu0
    %1207 = vdwg.mxu0
    %v1208 = vmax.f32 %v1120, 0.0
    %v1209 = vmax.f32 %v1122, 0.0
    %v1210 = vmax.f32 %v1202, 0.0
    %v1211 = vmax.f32 %v1204, 0.0
    %v1212 = vpack.c.bf16 %v1208, %v1208
    %v1213 = vpack.c.bf16 %v1209, %v1209
    %v1214 = vpack.c.bf16 %v1210, %v1210
    %v1215 = vpack.c.bf16 %v1211, %v1211
    %s1216 = scalar_lea.vmem [#allocation4], 1024
    %v1217 = vld [vmem:[%s1216] sm:$0xff]
    %v1218 = vld [vmem:[%s1216 + $0x8] sm:$0xff]
    %v1219 = vld [vmem:[%s1216 + $0x10] sm:$0xff]
    %v1220 = vld [vmem:[%s1216 + $0x18] sm:$0xff]
    %v1221 = vld [vmem:[%s1216 + $0x20] sm:$0xff]
    %v1222 = vld [vmem:[%s1216 + $0x28] sm:$0xff]
    %v1223 = vld [vmem:[%s1216 + $0x30] sm:$0xff]
    %v1224 = vld [vmem:[%s1216 + $0x38] sm:$0xff]
    %v1225 = vld [vmem:[%s1216 + $0x40] sm:$0xff]
    %v1226 = vld [vmem:[%s1216 + $0x48] sm:$0xff]
    %v1227 = vld [vmem:[%s1216 + $0x50] sm:$0xff]
    %v1228 = vld [vmem:[%s1216 + $0x58] sm:$0xff]
    %v1229 = vld [vmem:[%s1216 + $0x60] sm:$0xff]
    %v1230 = vld [vmem:[%s1216 + $0x68] sm:$0xff]
    %v1231 = vld [vmem:[%s1216 + $0x70] sm:$0xff]
    %v1232 = vld [vmem:[%s1216 + $0x78] sm:$0xff]
    %v1233 = vld [vmem:[%s1216 + $0x80] sm:$0xff]
    %v1234 = vld [vmem:[%s1216 + $0x88] sm:$0xff]
    %v1235 = vld [vmem:[%s1216 + $0x90] sm:$0xff]
    %v1236 = vld [vmem:[%s1216 + $0x98] sm:$0xff]
    %v1237 = vld [vmem:[%s1216 + $0xa0] sm:$0xff]
    %v1238 = vld [vmem:[%s1216 + $0xa8] sm:$0xff]
    %v1239 = vld [vmem:[%s1216 + $0xb0] sm:$0xff]
    %v1240 = vld [vmem:[%s1216 + $0xb8] sm:$0xff]
    %v1241 = vld [vmem:[%s1216 + $0xc0] sm:$0xff]
    %v1242 = vld [vmem:[%s1216 + $0xc8] sm:$0xff]
    %v1243 = vld [vmem:[%s1216 + $0xd0] sm:$0xff]
    %v1244 = vld [vmem:[%s1216 + $0xd8] sm:$0xff]
    %v1245 = vld [vmem:[%s1216 + $0xe0] sm:$0xff]
    %v1246 = vld [vmem:[%s1216 + $0xe8] sm:$0xff]
    %v1247 = vld [vmem:[%s1216 + $0xf0] sm:$0xff]
    %v1248 = vld [vmem:[%s1216 + $0xf8] sm:$0xff]
    %v1249 = vld [vmem:[%s1216 + $0x100] sm:$0xff]
    %v1250 = vld [vmem:[%s1216 + $0x108] sm:$0xff]
    %v1251 = vld [vmem:[%s1216 + $0x110] sm:$0xff]
    %v1252 = vld [vmem:[%s1216 + $0x118] sm:$0xff]
    %v1253 = vld [vmem:[%s1216 + $0x120] sm:$0xff]
    %v1254 = vld [vmem:[%s1216 + $0x128] sm:$0xff]
    %v1255 = vld [vmem:[%s1216 + $0x130] sm:$0xff]
    %v1256 = vld [vmem:[%s1216 + $0x138] sm:$0xff]
    %v1257 = vld [vmem:[%s1216 + $0x140] sm:$0xff]
    %v1258 = vld [vmem:[%s1216 + $0x148] sm:$0xff]
    %v1259 = vld [vmem:[%s1216 + $0x150] sm:$0xff]
    %v1260 = vld [vmem:[%s1216 + $0x158] sm:$0xff]
    %v1261 = vld [vmem:[%s1216 + $0x160] sm:$0xff]
    %v1262 = vld [vmem:[%s1216 + $0x168] sm:$0xff]
    %v1263 = vld [vmem:[%s1216 + $0x170] sm:$0xff]
    %v1264 = vld [vmem:[%s1216 + $0x178] sm:$0xff]
    %v1265 = vld [vmem:[%s1216 + $0x180] sm:$0xff]
    %v1266 = vld [vmem:[%s1216 + $0x188] sm:$0xff]
    %v1267 = vld [vmem:[%s1216 + $0x190] sm:$0xff]
    %v1268 = vld [vmem:[%s1216 + $0x198] sm:$0xff]
    %v1269 = vld [vmem:[%s1216 + $0x1a0] sm:$0xff]
    %v1270 = vld [vmem:[%s1216 + $0x1a8] sm:$0xff]
    %v1271 = vld [vmem:[%s1216 + $0x1b0] sm:$0xff]
    %v1272 = vld [vmem:[%s1216 + $0x1b8] sm:$0xff]
    %v1273 = vld [vmem:[%s1216 + $0x1c0] sm:$0xff]
    %v1274 = vld [vmem:[%s1216 + $0x1c8] sm:$0xff]
    %v1275 = vld [vmem:[%s1216 + $0x1d0] sm:$0xff]
    %v1276 = vld [vmem:[%s1216 + $0x1d8] sm:$0xff]
    %v1277 = vld [vmem:[%s1216 + $0x1e0] sm:$0xff]
    %v1278 = vld [vmem:[%s1216 + $0x1e8] sm:$0xff]
    %v1279 = vld [vmem:[%s1216 + $0x1f0] sm:$0xff]
    %v1280 = vld [vmem:[%s1216 + $0x1f8] sm:$0xff]
    %v1281 = vld [vmem:[%s1216 + $0x200] sm:$0xff]
    %v1282 = vld [vmem:[%s1216 + $0x208] sm:$0xff]
    %v1283 = vld [vmem:[%s1216 + $0x210] sm:$0xff]
    %v1284 = vld [vmem:[%s1216 + $0x218] sm:$0xff]
    %v1285 = vld [vmem:[%s1216 + $0x220] sm:$0xff]
    %v1286 = vld [vmem:[%s1216 + $0x228] sm:$0xff]
    %v1287 = vld [vmem:[%s1216 + $0x230] sm:$0xff]
    %v1288 = vld [vmem:[%s1216 + $0x238] sm:$0xff]
    %v1289 = vld [vmem:[%s1216 + $0x240] sm:$0xff]
    %v1290 = vld [vmem:[%s1216 + $0x248] sm:$0xff]
    %v1291 = vld [vmem:[%s1216 + $0x250] sm:$0xff]
    %v1292 = vld [vmem:[%s1216 + $0x258] sm:$0xff]
    %v1293 = vld [vmem:[%s1216 + $0x260] sm:$0xff]
    %v1294 = vld [vmem:[%s1216 + $0x268] sm:$0xff]
    %v1295 = vld [vmem:[%s1216 + $0x270] sm:$0xff]
    %v1296 = vld [vmem:[%s1216 + $0x278] sm:$0xff]
    %v1297 = vld [vmem:[%s1216 + $0x280] sm:$0xff]
    %v1298 = vld [vmem:[%s1216 + $0x288] sm:$0xff]
    %v1299 = vld [vmem:[%s1216 + $0x290] sm:$0xff]
    %v1300 = vld [vmem:[%s1216 + $0x298] sm:$0xff]
    %v1301 = vld [vmem:[%s1216 + $0x2a0] sm:$0xff]
    %v1302 = vld [vmem:[%s1216 + $0x2a8] sm:$0xff]
    %v1303 = vld [vmem:[%s1216 + $0x2b0] sm:$0xff]
    %v1304 = vld [vmem:[%s1216 + $0x2b8] sm:$0xff]
    %v1305 = vld [vmem:[%s1216 + $0x2c0] sm:$0xff]
    %v1306 = vld [vmem:[%s1216 + $0x2c8] sm:$0xff]
    %v1307 = vld [vmem:[%s1216 + $0x2d0] sm:$0xff]
    %v1308 = vld [vmem:[%s1216 + $0x2d8] sm:$0xff]
    %v1309 = vld [vmem:[%s1216 + $0x2e0] sm:$0xff]
    %v1310 = vld [vmem:[%s1216 + $0x2e8] sm:$0xff]
    %v1311 = vld [vmem:[%s1216 + $0x2f0] sm:$0xff]
    %v1312 = vld [vmem:[%s1216 + $0x2f8] sm:$0xff]
    %v1313 = vld [vmem:[%s1216 + $0x300] sm:$0xff]
    %v1314 = vld [vmem:[%s1216 + $0x308] sm:$0xff]
    %v1315 = vld [vmem:[%s1216 + $0x310] sm:$0xff]
    %v1316 = vld [vmem:[%s1216 + $0x318] sm:$0xff]
    %v1317 = vld [vmem:[%s1216 + $0x320] sm:$0xff]
    %v1318 = vld [vmem:[%s1216 + $0x328] sm:$0xff]
    %v1319 = vld [vmem:[%s1216 + $0x330] sm:$0xff]
    %v1320 = vld [vmem:[%s1216 + $0x338] sm:$0xff]
    %v1321 = vld [vmem:[%s1216 + $0x340] sm:$0xff]
    %v1322 = vld [vmem:[%s1216 + $0x348] sm:$0xff]
    %v1323 = vld [vmem:[%s1216 + $0x350] sm:$0xff]
    %v1324 = vld [vmem:[%s1216 + $0x358] sm:$0xff]
    %v1325 = vld [vmem:[%s1216 + $0x360] sm:$0xff]
    %v1326 = vld [vmem:[%s1216 + $0x368] sm:$0xff]
    %v1327 = vld [vmem:[%s1216 + $0x370] sm:$0xff]
    %v1328 = vld [vmem:[%s1216 + $0x378] sm:$0xff]
    %v1329 = vld [vmem:[%s1216 + $0x380] sm:$0xff]
    %v1330 = vld [vmem:[%s1216 + $0x388] sm:$0xff]
    %v1331 = vld [vmem:[%s1216 + $0x390] sm:$0xff]
    %v1332 = vld [vmem:[%s1216 + $0x398] sm:$0xff]
    %v1333 = vld [vmem:[%s1216 + $0x3a0] sm:$0xff]
    %v1334 = vld [vmem:[%s1216 + $0x3a8] sm:$0xff]
    %v1335 = vld [vmem:[%s1216 + $0x3b0] sm:$0xff]
    %v1336 = vld [vmem:[%s1216 + $0x3b8] sm:$0xff]
    %v1337 = vld [vmem:[%s1216 + $0x3c0] sm:$0xff]
    %v1338 = vld [vmem:[%s1216 + $0x3c8] sm:$0xff]
    %v1339 = vld [vmem:[%s1216 + $0x3d0] sm:$0xff]
    %v1340 = vld [vmem:[%s1216 + $0x3d8] sm:$0xff]
    %v1341 = vld [vmem:[%s1216 + $0x3e0] sm:$0xff]
    %v1342 = vld [vmem:[%s1216 + $0x3e8] sm:$0xff]
    %v1343 = vld [vmem:[%s1216 + $0x3f0] sm:$0xff]
    %v1344 = vld [vmem:[%s1216 + $0x3f8] sm:$0xff]
    %s1345 = scalar_lea.vmem [#allocation6], 2
    %v1346 = vld [vmem:[%s1345] ss:$4 sm:$0xf]
    %v1348 = vlaneseq
    %v1349 = vshrl.u32 %v1348, 7
    %v1350 = vsub.s32 0, %v1349
    %v1351 = vrot.slane %v1346, %v1350
    %v1352 = vlaneseq
    %v1353 = vshrl.u32 %v1352, 7
    %v1354 = vsub.s32 1, %v1353
    %v1355 = vrot.slane %v1346, %v1354
    %v1356 = vlaneseq
    %v1357 = vshrl.u32 %v1356, 7
    %v1358 = vsub.s32 2, %v1357
    %v1359 = vrot.slane %v1346, %v1358
    %v1360 = vlaneseq
    %v1361 = vshrl.u32 %v1360, 7
    %v1362 = vsub.s32 3, %v1361
    %v1363 = vrot.slane %v1346, %v1362
    %v1496 = vunpack.c.l.b16 %v1217
    %v1497 = vunpack.c.h.b16 %v1217
    %v1498 = vunpack.c.l.b16 %v1218
    %v1499 = vunpack.c.h.b16 %v1218
    %v1500 = vunpack.c.l.b16 %v1219
    %v1501 = vunpack.c.h.b16 %v1219
    %v1502 = vunpack.c.l.b16 %v1220
    %v1503 = vunpack.c.h.b16 %v1220
    %v1504 = vunpack.c.l.b16 %v1221
    %v1505 = vunpack.c.h.b16 %v1221
    %v1506 = vunpack.c.l.b16 %v1222
    %v1507 = vunpack.c.h.b16 %v1222
    %v1508 = vunpack.c.l.b16 %v1223
    %v1509 = vunpack.c.h.b16 %v1223
    %v1510 = vunpack.c.l.b16 %v1224
    %v1511 = vunpack.c.h.b16 %v1224
    %v1512 = vunpack.c.l.b16 %v1225
    %v1513 = vunpack.c.h.b16 %v1225
    %v1514 = vunpack.c.l.b16 %v1226
    %v1515 = vunpack.c.h.b16 %v1226
    %v1516 = vunpack.c.l.b16 %v1227
    %v1517 = vunpack.c.h.b16 %v1227
    %v1518 = vunpack.c.l.b16 %v1228
    %v1519 = vunpack.c.h.b16 %v1228
    %v1520 = vunpack.c.l.b16 %v1229
    %v1521 = vunpack.c.h.b16 %v1229
    %v1522 = vunpack.c.l.b16 %v1230
    %v1523 = vunpack.c.h.b16 %v1230
    %v1524 = vunpack.c.l.b16 %v1231
    %v1525 = vunpack.c.h.b16 %v1231
    %v1526 = vunpack.c.l.b16 %v1232
    %v1527 = vunpack.c.h.b16 %v1232
    %v1528 = vunpack.c.l.b16 %v1233
    %v1529 = vunpack.c.h.b16 %v1233
    %v1530 = vunpack.c.l.b16 %v1234
    %v1531 = vunpack.c.h.b16 %v1234
    %v1532 = vunpack.c.l.b16 %v1235
    %v1533 = vunpack.c.h.b16 %v1235
    %v1534 = vunpack.c.l.b16 %v1236
    %v1535 = vunpack.c.h.b16 %v1236
    %v1536 = vunpack.c.l.b16 %v1237
    %v1537 = vunpack.c.h.b16 %v1237
    %v1538 = vunpack.c.l.b16 %v1238
    %v1539 = vunpack.c.h.b16 %v1238
    %v1540 = vunpack.c.l.b16 %v1239
    %v1541 = vunpack.c.h.b16 %v1239
    %v1542 = vunpack.c.l.b16 %v1240
    %v1543 = vunpack.c.h.b16 %v1240
    %v1544 = vunpack.c.l.b16 %v1241
    %v1545 = vunpack.c.h.b16 %v1241
    %v1546 = vunpack.c.l.b16 %v1242
    %v1547 = vunpack.c.h.b16 %v1242
    %v1548 = vunpack.c.l.b16 %v1243
    %v1549 = vunpack.c.h.b16 %v1243
    %v1550 = vunpack.c.l.b16 %v1244
    %v1551 = vunpack.c.h.b16 %v1244
    %v1552 = vunpack.c.l.b16 %v1245
    %v1553 = vunpack.c.h.b16 %v1245
    %v1554 = vunpack.c.l.b16 %v1246
    %v1555 = vunpack.c.h.b16 %v1246
    %v1556 = vunpack.c.l.b16 %v1247
    %v1557 = vunpack.c.h.b16 %v1247
    %v1558 = vunpack.c.l.b16 %v1248
    %v1559 = vunpack.c.h.b16 %v1248
    %v1560 = vunpack.c.l.b16 %v1249
    %v1561 = vunpack.c.h.b16 %v1249
    %v1562 = vunpack.c.l.b16 %v1250
    %v1563 = vunpack.c.h.b16 %v1250
    %v1564 = vunpack.c.l.b16 %v1251
    %v1565 = vunpack.c.h.b16 %v1251
    %v1566 = vunpack.c.l.b16 %v1252
    %v1567 = vunpack.c.h.b16 %v1252
    %v1568 = vunpack.c.l.b16 %v1253
    %v1569 = vunpack.c.h.b16 %v1253
    %v1570 = vunpack.c.l.b16 %v1254
    %v1571 = vunpack.c.h.b16 %v1254
    %v1572 = vunpack.c.l.b16 %v1255
    %v1573 = vunpack.c.h.b16 %v1255
    %v1574 = vunpack.c.l.b16 %v1256
    %v1575 = vunpack.c.h.b16 %v1256
    %v1576 = vunpack.c.l.b16 %v1257
    %v1577 = vunpack.c.h.b16 %v1257
    %v1578 = vunpack.c.l.b16 %v1258
    %v1579 = vunpack.c.h.b16 %v1258
    %v1580 = vunpack.c.l.b16 %v1259
    %v1581 = vunpack.c.h.b16 %v1259
    %v1582 = vunpack.c.l.b16 %v1260
    %v1583 = vunpack.c.h.b16 %v1260
    %v1584 = vunpack.c.l.b16 %v1261
    %v1585 = vunpack.c.h.b16 %v1261
    %v1586 = vunpack.c.l.b16 %v1262
    %v1587 = vunpack.c.h.b16 %v1262
    %v1588 = vunpack.c.l.b16 %v1263
    %v1589 = vunpack.c.h.b16 %v1263
    %v1590 = vunpack.c.l.b16 %v1264
    %v1591 = vunpack.c.h.b16 %v1264
    %v1592 = vunpack.c.l.b16 %v1265
    %v1593 = vunpack.c.h.b16 %v1265
    %v1594 = vunpack.c.l.b16 %v1266
    %v1595 = vunpack.c.h.b16 %v1266
    %v1596 = vunpack.c.l.b16 %v1267
    %v1597 = vunpack.c.h.b16 %v1267
    %v1598 = vunpack.c.l.b16 %v1268
    %v1599 = vunpack.c.h.b16 %v1268
    %v1600 = vunpack.c.l.b16 %v1269
    %v1601 = vunpack.c.h.b16 %v1269
    %v1602 = vunpack.c.l.b16 %v1270
    %v1603 = vunpack.c.h.b16 %v1270
    %v1604 = vunpack.c.l.b16 %v1271
    %v1605 = vunpack.c.h.b16 %v1271
    %v1606 = vunpack.c.l.b16 %v1272
    %v1607 = vunpack.c.h.b16 %v1272
    %v1608 = vunpack.c.l.b16 %v1273
    %v1609 = vunpack.c.h.b16 %v1273
    %v1610 = vunpack.c.l.b16 %v1274
    %v1611 = vunpack.c.h.b16 %v1274
    %v1612 = vunpack.c.l.b16 %v1275
    %v1613 = vunpack.c.h.b16 %v1275
    %v1614 = vunpack.c.l.b16 %v1276
    %v1615 = vunpack.c.h.b16 %v1276
    %v1616 = vunpack.c.l.b16 %v1277
    %v1617 = vunpack.c.h.b16 %v1277
    %v1618 = vunpack.c.l.b16 %v1278
    %v1619 = vunpack.c.h.b16 %v1278
    %v1620 = vunpack.c.l.b16 %v1279
    %v1621 = vunpack.c.h.b16 %v1279
    %v1622 = vunpack.c.l.b16 %v1280
    %v1623 = vunpack.c.h.b16 %v1280
    %v1624 = vunpack.c.l.b16 %v1281
    %v1625 = vunpack.c.h.b16 %v1281
    %v1626 = vunpack.c.l.b16 %v1282
    %v1627 = vunpack.c.h.b16 %v1282
    %v1628 = vunpack.c.l.b16 %v1283
    %v1629 = vunpack.c.h.b16 %v1283
    %v1630 = vunpack.c.l.b16 %v1284
    %v1631 = vunpack.c.h.b16 %v1284
    %v1632 = vunpack.c.l.b16 %v1285
    %v1633 = vunpack.c.h.b16 %v1285
    %v1634 = vunpack.c.l.b16 %v1286
    %v1635 = vunpack.c.h.b16 %v1286
    %v1636 = vunpack.c.l.b16 %v1287
    %v1637 = vunpack.c.h.b16 %v1287
    %v1638 = vunpack.c.l.b16 %v1288
    %v1639 = vunpack.c.h.b16 %v1288
    %v1640 = vunpack.c.l.b16 %v1289
    %v1641 = vunpack.c.h.b16 %v1289
    %v1642 = vunpack.c.l.b16 %v1290
    %v1643 = vunpack.c.h.b16 %v1290
    %v1644 = vunpack.c.l.b16 %v1291
    %v1645 = vunpack.c.h.b16 %v1291
    %v1646 = vunpack.c.l.b16 %v1292
    %v1647 = vunpack.c.h.b16 %v1292
    %v1648 = vunpack.c.l.b16 %v1293
    %v1649 = vunpack.c.h.b16 %v1293
    %v1650 = vunpack.c.l.b16 %v1294
    %v1651 = vunpack.c.h.b16 %v1294
    %v1652 = vunpack.c.l.b16 %v1295
    %v1653 = vunpack.c.h.b16 %v1295
    %v1654 = vunpack.c.l.b16 %v1296
    %v1655 = vunpack.c.h.b16 %v1296
    %v1656 = vunpack.c.l.b16 %v1297
    %v1657 = vunpack.c.h.b16 %v1297
    %v1658 = vunpack.c.l.b16 %v1298
    %v1659 = vunpack.c.h.b16 %v1298
    %v1660 = vunpack.c.l.b16 %v1299
    %v1661 = vunpack.c.h.b16 %v1299
    %v1662 = vunpack.c.l.b16 %v1300
    %v1663 = vunpack.c.h.b16 %v1300
    %v1664 = vunpack.c.l.b16 %v1301
    %v1665 = vunpack.c.h.b16 %v1301
    %v1666 = vunpack.c.l.b16 %v1302
    %v1667 = vunpack.c.h.b16 %v1302
    %v1668 = vunpack.c.l.b16 %v1303
    %v1669 = vunpack.c.h.b16 %v1303
    %v1670 = vunpack.c.l.b16 %v1304
    %v1671 = vunpack.c.h.b16 %v1304
    %v1672 = vunpack.c.l.b16 %v1305
    %v1673 = vunpack.c.h.b16 %v1305
    %v1674 = vunpack.c.l.b16 %v1306
    %v1675 = vunpack.c.h.b16 %v1306
    %v1676 = vunpack.c.l.b16 %v1307
    %v1677 = vunpack.c.h.b16 %v1307
    %v1678 = vunpack.c.l.b16 %v1308
    %v1679 = vunpack.c.h.b16 %v1308
    %v1680 = vunpack.c.l.b16 %v1309
    %v1681 = vunpack.c.h.b16 %v1309
    %v1682 = vunpack.c.l.b16 %v1310
    %v1683 = vunpack.c.h.b16 %v1310
    %v1684 = vunpack.c.l.b16 %v1311
    %v1685 = vunpack.c.h.b16 %v1311
    %v1686 = vunpack.c.l.b16 %v1312
    %v1687 = vunpack.c.h.b16 %v1312
    %v1688 = vunpack.c.l.b16 %v1313
    %v1689 = vunpack.c.h.b16 %v1313
    %v1690 = vunpack.c.l.b16 %v1314
    %v1691 = vunpack.c.h.b16 %v1314
    %v1692 = vunpack.c.l.b16 %v1315
    %v1693 = vunpack.c.h.b16 %v1315
    %v1694 = vunpack.c.l.b16 %v1316
    %v1695 = vunpack.c.h.b16 %v1316
    %v1696 = vunpack.c.l.b16 %v1317
    %v1697 = vunpack.c.h.b16 %v1317
    %v1698 = vunpack.c.l.b16 %v1318
    %v1699 = vunpack.c.h.b16 %v1318
    %v1700 = vunpack.c.l.b16 %v1319
    %v1701 = vunpack.c.h.b16 %v1319
    %v1702 = vunpack.c.l.b16 %v1320
    %v1703 = vunpack.c.h.b16 %v1320
    %v1704 = vunpack.c.l.b16 %v1321
    %v1705 = vunpack.c.h.b16 %v1321
    %v1706 = vunpack.c.l.b16 %v1322
    %v1707 = vunpack.c.h.b16 %v1322
    %v1708 = vunpack.c.l.b16 %v1323
    %v1709 = vunpack.c.h.b16 %v1323
    %v1710 = vunpack.c.l.b16 %v1324
    %v1711 = vunpack.c.h.b16 %v1324
    %v1712 = vunpack.c.l.b16 %v1325
    %v1713 = vunpack.c.h.b16 %v1325
    %v1714 = vunpack.c.l.b16 %v1326
    %v1715 = vunpack.c.h.b16 %v1326
    %v1716 = vunpack.c.l.b16 %v1327
    %v1717 = vunpack.c.h.b16 %v1327
    %v1718 = vunpack.c.l.b16 %v1328
    %v1719 = vunpack.c.h.b16 %v1328
    %v1720 = vunpack.c.l.b16 %v1329
    %v1721 = vunpack.c.h.b16 %v1329
    %v1722 = vunpack.c.l.b16 %v1330
    %v1723 = vunpack.c.h.b16 %v1330
    %v1724 = vunpack.c.l.b16 %v1331
    %v1725 = vunpack.c.h.b16 %v1331
    %v1726 = vunpack.c.l.b16 %v1332
    %v1727 = vunpack.c.h.b16 %v1332
    %v1728 = vunpack.c.l.b16 %v1333
    %v1729 = vunpack.c.h.b16 %v1333
    %v1730 = vunpack.c.l.b16 %v1334
    %v1731 = vunpack.c.h.b16 %v1334
    %v1732 = vunpack.c.l.b16 %v1335
    %v1733 = vunpack.c.h.b16 %v1335
    %v1734 = vunpack.c.l.b16 %v1336
    %v1735 = vunpack.c.h.b16 %v1336
    %v1736 = vunpack.c.l.b16 %v1337
    %v1737 = vunpack.c.h.b16 %v1337
    %v1738 = vunpack.c.l.b16 %v1338
    %v1739 = vunpack.c.h.b16 %v1338
    %v1740 = vunpack.c.l.b16 %v1339
    %v1741 = vunpack.c.h.b16 %v1339
    %v1742 = vunpack.c.l.b16 %v1340
    %v1743 = vunpack.c.h.b16 %v1340
    %v1744 = vunpack.c.l.b16 %v1341
    %v1745 = vunpack.c.h.b16 %v1341
    %v1746 = vunpack.c.l.b16 %v1342
    %v1747 = vunpack.c.h.b16 %v1342
    %v1748 = vunpack.c.l.b16 %v1343
    %v1749 = vunpack.c.h.b16 %v1343
    %v1750 = vunpack.c.l.b16 %v1344
    %v1751 = vunpack.c.h.b16 %v1344
    %v1752 = vpack.c.b16 %v1500, %v1496
    %v1753 = vpack.c.b16 %v1501, %v1497
    %v1754 = vpack.c.b16 %v1502, %v1498
    %v1755 = vpack.c.b16 %v1503, %v1499
    %v1756 = vpack.c.b16 %v1508, %v1504
    %v1757 = vpack.c.b16 %v1509, %v1505
    %v1758 = vpack.c.b16 %v1510, %v1506
    %v1759 = vpack.c.b16 %v1511, %v1507
    %v1760 = vpack.c.b16 %v1516, %v1512
    %v1761 = vpack.c.b16 %v1517, %v1513
    %v1762 = vpack.c.b16 %v1518, %v1514
    %v1763 = vpack.c.b16 %v1519, %v1515
    %v1764 = vpack.c.b16 %v1524, %v1520
    %v1765 = vpack.c.b16 %v1525, %v1521
    %v1766 = vpack.c.b16 %v1526, %v1522
    %v1767 = vpack.c.b16 %v1527, %v1523
    %v1768 = vpack.c.b16 %v1532, %v1528
    %v1769 = vpack.c.b16 %v1533, %v1529
    %v1770 = vpack.c.b16 %v1534, %v1530
    %v1771 = vpack.c.b16 %v1535, %v1531
    %v1772 = vpack.c.b16 %v1540, %v1536
    %v1773 = vpack.c.b16 %v1541, %v1537
    %v1774 = vpack.c.b16 %v1542, %v1538
    %v1775 = vpack.c.b16 %v1543, %v1539
    %v1776 = vpack.c.b16 %v1548, %v1544
    %v1777 = vpack.c.b16 %v1549, %v1545
    %v1778 = vpack.c.b16 %v1550, %v1546
    %v1779 = vpack.c.b16 %v1551, %v1547
    %v1780 = vpack.c.b16 %v1556, %v1552
    %v1781 = vpack.c.b16 %v1557, %v1553
    %v1782 = vpack.c.b16 %v1558, %v1554
    %v1783 = vpack.c.b16 %v1559, %v1555
    %v1784 = vpack.c.b16 %v1564, %v1560
    %v1785 = vpack.c.b16 %v1565, %v1561
    %v1786 = vpack.c.b16 %v1566, %v1562
    %v1787 = vpack.c.b16 %v1567, %v1563
    %v1788 = vpack.c.b16 %v1572, %v1568
    %v1789 = vpack.c.b16 %v1573, %v1569
    %v1790 = vpack.c.b16 %v1574, %v1570
    %v1791 = vpack.c.b16 %v1575, %v1571
    %v1792 = vpack.c.b16 %v1580, %v1576
    %v1793 = vpack.c.b16 %v1581, %v1577
    %v1794 = vpack.c.b16 %v1582, %v1578
    %v1795 = vpack.c.b16 %v1583, %v1579
    %v1796 = vpack.c.b16 %v1588, %v1584
    %v1797 = vpack.c.b16 %v1589, %v1585
    %v1798 = vpack.c.b16 %v1590, %v1586
    %v1799 = vpack.c.b16 %v1591, %v1587
    %v1800 = vpack.c.b16 %v1596, %v1592
    %v1801 = vpack.c.b16 %v1597, %v1593
    %v1802 = vpack.c.b16 %v1598, %v1594
    %v1803 = vpack.c.b16 %v1599, %v1595
    %v1804 = vpack.c.b16 %v1604, %v1600
    %v1805 = vpack.c.b16 %v1605, %v1601
    %v1806 = vpack.c.b16 %v1606, %v1602
    %v1807 = vpack.c.b16 %v1607, %v1603
    %v1808 = vpack.c.b16 %v1612, %v1608
    %v1809 = vpack.c.b16 %v1613, %v1609
    %v1810 = vpack.c.b16 %v1614, %v1610
    %v1811 = vpack.c.b16 %v1615, %v1611
    %v1812 = vpack.c.b16 %v1620, %v1616
    %v1813 = vpack.c.b16 %v1621, %v1617
    %v1814 = vpack.c.b16 %v1622, %v1618
    %v1815 = vpack.c.b16 %v1623, %v1619
    %v1816 = vpack.c.b16 %v1628, %v1624
    %v1817 = vpack.c.b16 %v1629, %v1625
    %v1818 = vpack.c.b16 %v1630, %v1626
    %v1819 = vpack.c.b16 %v1631, %v1627
    %v1820 = vpack.c.b16 %v1636, %v1632
    %v1821 = vpack.c.b16 %v1637, %v1633
    %v1822 = vpack.c.b16 %v1638, %v1634
    %v1823 = vpack.c.b16 %v1639, %v1635
    %v1824 = vpack.c.b16 %v1644, %v1640
    %v1825 = vpack.c.b16 %v1645, %v1641
    %v1826 = vpack.c.b16 %v1646, %v1642
    %v1827 = vpack.c.b16 %v1647, %v1643
    %v1828 = vpack.c.b16 %v1652, %v1648
    %v1829 = vpack.c.b16 %v1653, %v1649
    %v1830 = vpack.c.b16 %v1654, %v1650
    %v1831 = vpack.c.b16 %v1655, %v1651
    %v1832 = vpack.c.b16 %v1660, %v1656
    %v1833 = vpack.c.b16 %v1661, %v1657
    %v1834 = vpack.c.b16 %v1662, %v1658
    %v1835 = vpack.c.b16 %v1663, %v1659
    %v1836 = vpack.c.b16 %v1668, %v1664
    %v1837 = vpack.c.b16 %v1669, %v1665
    %v1838 = vpack.c.b16 %v1670, %v1666
    %v1839 = vpack.c.b16 %v1671, %v1667
    %v1840 = vpack.c.b16 %v1676, %v1672
    %v1841 = vpack.c.b16 %v1677, %v1673
    %v1842 = vpack.c.b16 %v1678, %v1674
    %v1843 = vpack.c.b16 %v1679, %v1675
    %v1844 = vpack.c.b16 %v1684, %v1680
    %v1845 = vpack.c.b16 %v1685, %v1681
    %v1846 = vpack.c.b16 %v1686, %v1682
    %v1847 = vpack.c.b16 %v1687, %v1683
    %v1848 = vpack.c.b16 %v1692, %v1688
    %v1849 = vpack.c.b16 %v1693, %v1689
    %v1850 = vpack.c.b16 %v1694, %v1690
    %v1851 = vpack.c.b16 %v1695, %v1691
    %v1852 = vpack.c.b16 %v1700, %v1696
    %v1853 = vpack.c.b16 %v1701, %v1697
    %v1854 = vpack.c.b16 %v1702, %v1698
    %v1855 = vpack.c.b16 %v1703, %v1699
    %v1856 = vpack.c.b16 %v1708, %v1704
    %v1857 = vpack.c.b16 %v1709, %v1705
    %v1858 = vpack.c.b16 %v1710, %v1706
    %v1859 = vpack.c.b16 %v1711, %v1707
    %v1860 = vpack.c.b16 %v1716, %v1712
    %v1861 = vpack.c.b16 %v1717, %v1713
    %v1862 = vpack.c.b16 %v1718, %v1714
    %v1863 = vpack.c.b16 %v1719, %v1715
    %v1864 = vpack.c.b16 %v1724, %v1720
    %v1865 = vpack.c.b16 %v1725, %v1721
    %v1866 = vpack.c.b16 %v1726, %v1722
    %v1867 = vpack.c.b16 %v1727, %v1723
    %v1868 = vpack.c.b16 %v1732, %v1728
    %v1869 = vpack.c.b16 %v1733, %v1729
    %v1870 = vpack.c.b16 %v1734, %v1730
    %v1871 = vpack.c.b16 %v1735, %v1731
    %v1872 = vpack.c.b16 %v1740, %v1736
    %v1873 = vpack.c.b16 %v1741, %v1737
    %v1874 = vpack.c.b16 %v1742, %v1738
    %v1875 = vpack.c.b16 %v1743, %v1739
    %v1876 = vpack.c.b16 %v1748, %v1744
    %v1877 = vpack.c.b16 %v1749, %v1745
    %v1878 = vpack.c.b16 %v1750, %v1746
    %v1879 = vpack.c.b16 %v1751, %v1747
    %2008 = vmatprep.subr.bf16.mxu0 %v1753
    %2009 = vmatpush1.bf16.msra.mxu0 %v1752
    %2010 = vmatprep.subr.bf16.mxu0 %v1757
    %2011 = vmatpush1.bf16.msra.mxu0 %v1756
    %2012 = vmatprep.subr.bf16.mxu0 %v1761
    %2013 = vmatpush1.bf16.msra.mxu0 %v1760
    %2014 = vmatprep.subr.bf16.mxu0 %v1765
    %2015 = vmatpush1.bf16.msra.mxu0 %v1764
    %2016 = vmatprep.subr.bf16.mxu0 %v1769
    %2017 = vmatpush1.bf16.msra.mxu0 %v1768
    %2018 = vmatprep.subr.bf16.mxu0 %v1773
    %2019 = vmatpush1.bf16.msra.mxu0 %v1772
    %2020 = vmatprep.subr.bf16.mxu0 %v1777
    %2021 = vmatpush1.bf16.msra.mxu0 %v1776
    %2022 = vmatprep.subr.bf16.mxu0 %v1781
    %2023 = vmatpush1.bf16.msra.mxu0 %v1780
    %2024 = vmatprep.subr.bf16.mxu0 %v1785
    %2025 = vmatpush1.bf16.msra.mxu0 %v1784
    %2026 = vmatprep.subr.bf16.mxu0 %v1789
    %2027 = vmatpush1.bf16.msra.mxu0 %v1788
    %2028 = vmatprep.subr.bf16.mxu0 %v1793
    %2029 = vmatpush1.bf16.msra.mxu0 %v1792
    %2030 = vmatprep.subr.bf16.mxu0 %v1797
    %2031 = vmatpush1.bf16.msra.mxu0 %v1796
    %2032 = vmatprep.subr.bf16.mxu0 %v1801
    %2033 = vmatpush1.bf16.msra.mxu0 %v1800
    %2034 = vmatprep.subr.bf16.mxu0 %v1805
    %2035 = vmatpush1.bf16.msra.mxu0 %v1804
    %2036 = vmatprep.subr.bf16.mxu0 %v1809
    %2037 = vmatpush1.bf16.msra.mxu0 %v1808
    %2038 = vmatprep.subr.bf16.mxu0 %v1813
    %2039 = vmatpush1.bf16.msra.mxu0 %v1812
    %2040 = vmatprep.mubr.bf16.mxu0 %v1213
    %2041 = vmatmul.mubr.bf16.gmra.mrb[0].mxu0 %v1212
    %v2042 = vpop.f32.mrb[0].mxu0
    %v2043 = vadd.f32 %v1351, %v2042
    %v2044 = vpop.f32.mrb[0].mxu0
    %v2045 = vadd.f32 %v1355, %v2044
    %v2046 = vpop.f32.mrb[0].mxu0
    %v2047 = vpop.f32.mrb[0].mxu0
    %2048 = vdwg.mxu0
    %2049 = vmatprep.subr.bf16.mxu0 %v1817
    %2050 = vmatpush1.bf16.msra.mxu0 %v1816
    %2051 = vmatprep.subr.bf16.mxu0 %v1821
    %2052 = vmatpush1.bf16.msra.mxu0 %v1820
    %2053 = vmatprep.subr.bf16.mxu0 %v1825
    %2054 = vmatpush1.bf16.msra.mxu0 %v1824
    %2055 = vmatprep.subr.bf16.mxu0 %v1829
    %2056 = vmatpush1.bf16.msra.mxu0 %v1828
    %2057 = vmatprep.subr.bf16.mxu0 %v1833
    %2058 = vmatpush1.bf16.msra.mxu0 %v1832
    %2059 = vmatprep.subr.bf16.mxu0 %v1837
    %2060 = vmatpush1.bf16.msra.mxu0 %v1836
    %2061 = vmatprep.subr.bf16.mxu0 %v1841
    %2062 = vmatpush1.bf16.msra.mxu0 %v1840
    %2063 = vmatprep.subr.bf16.mxu0 %v1845
    %2064 = vmatpush1.bf16.msra.mxu0 %v1844
    %2065 = vmatprep.subr.bf16.mxu0 %v1849
    %2066 = vmatpush1.bf16.msra.mxu0 %v1848
    %2067 = vmatprep.subr.bf16.mxu0 %v1853
    %2068 = vmatpush1.bf16.msra.mxu0 %v1852
    %2069 = vmatprep.subr.bf16.mxu0 %v1857
    %2070 = vmatpush1.bf16.msra.mxu0 %v1856
    %2071 = vmatprep.subr.bf16.mxu0 %v1861
    %2072 = vmatpush1.bf16.msra.mxu0 %v1860
    %2073 = vmatprep.subr.bf16.mxu0 %v1865
    %2074 = vmatpush1.bf16.msra.mxu0 %v1864
    %2075 = vmatprep.subr.bf16.mxu0 %v1869
    %2076 = vmatpush1.bf16.msra.mxu0 %v1868
    %2077 = vmatprep.subr.bf16.mxu0 %v1873
    %2078 = vmatpush1.bf16.msra.mxu0 %v1872
    %2079 = vmatprep.subr.bf16.mxu0 %v1877
    %2080 = vmatpush1.bf16.msra.mxu0 %v1876
    %2081 = vmatprep.mubr.bf16.mxu0 %v1215
    %2082 = vmatmul.mubr.bf16.gmra.mrb[0].mxu0 %v1214
    %v2083 = vpop.f32.mrb[0].mxu0
    %v2084 = vadd.f32 %v2043, %v2083
    %v2085 = vpop.f32.mrb[0].mxu0
    %v2086 = vadd.f32 %v2045, %v2085
    %v2087 = vpop.f32.mrb[0].mxu0
    %v2088 = vpop.f32.mrb[0].mxu0
    %2089 = vdwg.mxu0
    %2090 = vmatprep.subr.bf16.mxu0 %v1755
    %2091 = vmatpush1.bf16.msra.mxu0 %v1754
    %2092 = vmatprep.subr.bf16.mxu0 %v1759
    %2093 = vmatpush1.bf16.msra.mxu0 %v1758
    %2094 = vmatprep.subr.bf16.mxu0 %v1763
    %2095 = vmatpush1.bf16.msra.mxu0 %v1762
    %2096 = vmatprep.subr.bf16.mxu0 %v1767
    %2097 = vmatpush1.bf16.msra.mxu0 %v1766
    %2098 = vmatprep.subr.bf16.mxu0 %v1771
    %2099 = vmatpush1.bf16.msra.mxu0 %v1770
    %2100 = vmatprep.subr.bf16.mxu0 %v1775
    %2101 = vmatpush1.bf16.msra.mxu0 %v1774
    %2102 = vmatprep.subr.bf16.mxu0 %v1779
    %2103 = vmatpush1.bf16.msra.mxu0 %v1778
    %2104 = vmatprep.subr.bf16.mxu0 %v1783
    %2105 = vmatpush1.bf16.msra.mxu0 %v1782
    %2106 = vmatprep.subr.bf16.mxu0 %v1787
    %2107 = vmatpush1.bf16.msra.mxu0 %v1786
    %2108 = vmatprep.subr.bf16.mxu0 %v1791
    %2109 = vmatpush1.bf16.msra.mxu0 %v1790
    %2110 = vmatprep.subr.bf16.mxu0 %v1795
    %2111 = vmatpush1.bf16.msra.mxu0 %v1794
    %2112 = vmatprep.subr.bf16.mxu0 %v1799
    %2113 = vmatpush1.bf16.msra.mxu0 %v1798
    %2114 = vmatprep.subr.bf16.mxu0 %v1803
    %2115 = vmatpush1.bf16.msra.mxu0 %v1802
    %2116 = vmatprep.subr.bf16.mxu0 %v1807
    %2117 = vmatpush1.bf16.msra.mxu0 %v1806
    %2118 = vmatprep.subr.bf16.mxu0 %v1811
    %2119 = vmatpush1.bf16.msra.mxu0 %v1810
    %2120 = vmatprep.subr.bf16.mxu0 %v1815
    %2121 = vmatpush1.bf16.msra.mxu0 %v1814
    %2122 = vmatprep.mubr.bf16.mxu0 %v1213
    %2123 = vmatmul.mubr.bf16.gmra.mrb[0].mxu0 %v1212
    %v2124 = vpop.f32.mrb[0].mxu0
    %v2125 = vadd.f32 %v1359, %v2124
    %v2126 = vpop.f32.mrb[0].mxu0
    %v2127 = vadd.f32 %v1363, %v2126
    %v2128 = vpop.f32.mrb[0].mxu0
    %v2129 = vpop.f32.mrb[0].mxu0
    %2130 = vdwg.mxu0
    %2131 = vmatprep.subr.bf16.mxu0 %v1819
    %2132 = vmatpush1.bf16.msra.mxu0 %v1818
    %2133 = vmatprep.subr.bf16.mxu0 %v1823
    %2134 = vmatpush1.bf16.msra.mxu0 %v1822
    %2135 = vmatprep.subr.bf16.mxu0 %v1827
    %2136 = vmatpush1.bf16.msra.mxu0 %v1826
    %2137 = vmatprep.subr.bf16.mxu0 %v1831
    %2138 = vmatpush1.bf16.msra.mxu0 %v1830
    %2139 = vmatprep.subr.bf16.mxu0 %v1835
    %2140 = vmatpush1.bf16.msra.mxu0 %v1834
    %2141 = vmatprep.subr.bf16.mxu0 %v1839
    %2142 = vmatpush1.bf16.msra.mxu0 %v1838
    %2143 = vmatprep.subr.bf16.mxu0 %v1843
    %2144 = vmatpush1.bf16.msra.mxu0 %v1842
    %2145 = vmatprep.subr.bf16.mxu0 %v1847
    %2146 = vmatpush1.bf16.msra.mxu0 %v1846
    %2147 = vmatprep.subr.bf16.mxu0 %v1851
    %2148 = vmatpush1.bf16.msra.mxu0 %v1850
    %2149 = vmatprep.subr.bf16.mxu0 %v1855
    %2150 = vmatpush1.bf16.msra.mxu0 %v1854
    %2151 = vmatprep.subr.bf16.mxu0 %v1859
    %2152 = vmatpush1.bf16.msra.mxu0 %v1858
    %2153 = vmatprep.subr.bf16.mxu0 %v1863
    %2154 = vmatpush1.bf16.msra.mxu0 %v1862
    %2155 = vmatprep.subr.bf16.mxu0 %v1867
    %2156 = vmatpush1.bf16.msra.mxu0 %v1866
    %2157 = vmatprep.subr.bf16.mxu0 %v1871
    %2158 = vmatpush1.bf16.msra.mxu0 %v1870
    %2159 = vmatprep.subr.bf16.mxu0 %v1875
    %2160 = vmatpush1.bf16.msra.mxu0 %v1874
    %2161 = vmatprep.subr.bf16.mxu0 %v1879
    %2162 = vmatpush1.bf16.msra.mxu0 %v1878
    %2163 = vmatprep.mubr.bf16.mxu0 %v1215
    %2164 = vmatmul.mubr.bf16.gmra.mrb[0].mxu0 %v1214
    %v2165 = vpop.f32.mrb[0].mxu0
    %v2166 = vadd.f32 %v2125, %v2165
    %v2167 = vpop.f32.mrb[0].mxu0
    %v2168 = vadd.f32 %v2127, %v2167
    %v2169 = vpop.f32.mrb[0].mxu0
    %v2170 = vpop.f32.mrb[0].mxu0
    %2171 = vdwg.mxu0
    %v2172 = vmax.f32 %v2084, 0.0
    %v2173 = vmax.f32 %v2086, 0.0
    %v2174 = vmax.f32 %v2166, 0.0
    %v2175 = vmax.f32 %v2168, 0.0
    %v2176 = vpack.c.bf16 %v2172, %v2172
    %v2177 = vpack.c.bf16 %v2173, %v2173
    %v2178 = vpack.c.bf16 %v2174, %v2174
    %v2179 = vpack.c.bf16 %v2175, %v2175
    %s2180 = scalar_lea.vmem [#allocation4], 2048
    %v2181 = vld [vmem:[%s2180] sm:$0xff]
    %v2182 = vld [vmem:[%s2180 + $0x8] sm:$0xff]
    %v2183 = vld [vmem:[%s2180 + $0x10] sm:$0xff]
    %v2184 = vld [vmem:[%s2180 + $0x18] sm:$0xff]
    %v2185 = vld [vmem:[%s2180 + $0x20] sm:$0xff]
    %v2186 = vld [vmem:[%s2180 + $0x28] sm:$0xff]
    %v2187 = vld [vmem:[%s2180 + $0x30] sm:$0xff]
    %v2188 = vld [vmem:[%s2180 + $0x38] sm:$0xff]
    %v2189 = vld [vmem:[%s2180 + $0x40] sm:$0xff]
    %v2190 = vld [vmem:[%s2180 + $0x48] sm:$0xff]
    %v2191 = vld [vmem:[%s2180 + $0x50] sm:$0xff]
    %v2192 = vld [vmem:[%s2180 + $0x58] sm:$0xff]
    %v2193 = vld [vmem:[%s2180 + $0x60] sm:$0xff]
    %v2194 = vld [vmem:[%s2180 + $0x68] sm:$0xff]
    %v2195 = vld [vmem:[%s2180 + $0x70] sm:$0xff]
    %v2196 = vld [vmem:[%s2180 + $0x78] sm:$0xff]
    %v2197 = vld [vmem:[%s2180 + $0x80] sm:$0xff]
    %v2198 = vld [vmem:[%s2180 + $0x88] sm:$0xff]
    %v2199 = vld [vmem:[%s2180 + $0x90] sm:$0xff]
    %v2200 = vld [vmem:[%s2180 + $0x98] sm:$0xff]
    %v2201 = vld [vmem:[%s2180 + $0xa0] sm:$0xff]
    %v2202 = vld [vmem:[%s2180 + $0xa8] sm:$0xff]
    %v2203 = vld [vmem:[%s2180 + $0xb0] sm:$0xff]
    %v2204 = vld [vmem:[%s2180 + $0xb8] sm:$0xff]
    %v2205 = vld [vmem:[%s2180 + $0xc0] sm:$0xff]
    %v2206 = vld [vmem:[%s2180 + $0xc8] sm:$0xff]
    %v2207 = vld [vmem:[%s2180 + $0xd0] sm:$0xff]
    %v2208 = vld [vmem:[%s2180 + $0xd8] sm:$0xff]
    %v2209 = vld [vmem:[%s2180 + $0xe0] sm:$0xff]
    %v2210 = vld [vmem:[%s2180 + $0xe8] sm:$0xff]
    %v2211 = vld [vmem:[%s2180 + $0xf0] sm:$0xff]
    %v2212 = vld [vmem:[%s2180 + $0xf8] sm:$0xff]
    %v2213 = vld [vmem:[%s2180 + $0x100] sm:$0xff]
    %v2214 = vld [vmem:[%s2180 + $0x108] sm:$0xff]
    %v2215 = vld [vmem:[%s2180 + $0x110] sm:$0xff]
    %v2216 = vld [vmem:[%s2180 + $0x118] sm:$0xff]
    %v2217 = vld [vmem:[%s2180 + $0x120] sm:$0xff]
    %v2218 = vld [vmem:[%s2180 + $0x128] sm:$0xff]
    %v2219 = vld [vmem:[%s2180 + $0x130] sm:$0xff]
    %v2220 = vld [vmem:[%s2180 + $0x138] sm:$0xff]
    %v2221 = vld [vmem:[%s2180 + $0x140] sm:$0xff]
    %v2222 = vld [vmem:[%s2180 + $0x148] sm:$0xff]
    %v2223 = vld [vmem:[%s2180 + $0x150] sm:$0xff]
    %v2224 = vld [vmem:[%s2180 + $0x158] sm:$0xff]
    %v2225 = vld [vmem:[%s2180 + $0x160] sm:$0xff]
    %v2226 = vld [vmem:[%s2180 + $0x168] sm:$0xff]
    %v2227 = vld [vmem:[%s2180 + $0x170] sm:$0xff]
    %v2228 = vld [vmem:[%s2180 + $0x178] sm:$0xff]
    %v2229 = vld [vmem:[%s2180 + $0x180] sm:$0xff]
    %v2230 = vld [vmem:[%s2180 + $0x188] sm:$0xff]
    %v2231 = vld [vmem:[%s2180 + $0x190] sm:$0xff]
    %v2232 = vld [vmem:[%s2180 + $0x198] sm:$0xff]
    %v2233 = vld [vmem:[%s2180 + $0x1a0] sm:$0xff]
    %v2234 = vld [vmem:[%s2180 + $0x1a8] sm:$0xff]
    %v2235 = vld [vmem:[%s2180 + $0x1b0] sm:$0xff]
    %v2236 = vld [vmem:[%s2180 + $0x1b8] sm:$0xff]
    %v2237 = vld [vmem:[%s2180 + $0x1c0] sm:$0xff]
    %v2238 = vld [vmem:[%s2180 + $0x1c8] sm:$0xff]
    %v2239 = vld [vmem:[%s2180 + $0x1d0] sm:$0xff]
    %v2240 = vld [vmem:[%s2180 + $0x1d8] sm:$0xff]
    %v2241 = vld [vmem:[%s2180 + $0x1e0] sm:$0xff]
    %v2242 = vld [vmem:[%s2180 + $0x1e8] sm:$0xff]
    %v2243 = vld [vmem:[%s2180 + $0x1f0] sm:$0xff]
    %v2244 = vld [vmem:[%s2180 + $0x1f8] sm:$0xff]
    %v2245 = vld [vmem:[%s2180 + $0x200] sm:$0xff]
    %v2246 = vld [vmem:[%s2180 + $0x208] sm:$0xff]
    %v2247 = vld [vmem:[%s2180 + $0x210] sm:$0xff]
    %v2248 = vld [vmem:[%s2180 + $0x218] sm:$0xff]
    %v2249 = vld [vmem:[%s2180 + $0x220] sm:$0xff]
    %v2250 = vld [vmem:[%s2180 + $0x228] sm:$0xff]
    %v2251 = vld [vmem:[%s2180 + $0x230] sm:$0xff]
    %v2252 = vld [vmem:[%s2180 + $0x238] sm:$0xff]
    %v2253 = vld [vmem:[%s2180 + $0x240] sm:$0xff]
    %v2254 = vld [vmem:[%s2180 + $0x248] sm:$0xff]
    %v2255 = vld [vmem:[%s2180 + $0x250] sm:$0xff]
    %v2256 = vld [vmem:[%s2180 + $0x258] sm:$0xff]
    %v2257 = vld [vmem:[%s2180 + $0x260] sm:$0xff]
    %v2258 = vld [vmem:[%s2180 + $0x268] sm:$0xff]
    %v2259 = vld [vmem:[%s2180 + $0x270] sm:$0xff]
    %v2260 = vld [vmem:[%s2180 + $0x278] sm:$0xff]
    %v2261 = vld [vmem:[%s2180 + $0x280] sm:$0xff]
    %v2262 = vld [vmem:[%s2180 + $0x288] sm:$0xff]
    %v2263 = vld [vmem:[%s2180 + $0x290] sm:$0xff]
    %v2264 = vld [vmem:[%s2180 + $0x298] sm:$0xff]
    %v2265 = vld [vmem:[%s2180 + $0x2a0] sm:$0xff]
    %v2266 = vld [vmem:[%s2180 + $0x2a8] sm:$0xff]
    %v2267 = vld [vmem:[%s2180 + $0x2b0] sm:$0xff]
    %v2268 = vld [vmem:[%s2180 + $0x2b8] sm:$0xff]
    %v2269 = vld [vmem:[%s2180 + $0x2c0] sm:$0xff]
    %v2270 = vld [vmem:[%s2180 + $0x2c8] sm:$0xff]
    %v2271 = vld [vmem:[%s2180 + $0x2d0] sm:$0xff]
    %v2272 = vld [vmem:[%s2180 + $0x2d8] sm:$0xff]
    %v2273 = vld [vmem:[%s2180 + $0x2e0] sm:$0xff]
    %v2274 = vld [vmem:[%s2180 + $0x2e8] sm:$0xff]
    %v2275 = vld [vmem:[%s2180 + $0x2f0] sm:$0xff]
    %v2276 = vld [vmem:[%s2180 + $0x2f8] sm:$0xff]
    %v2277 = vld [vmem:[%s2180 + $0x300] sm:$0xff]
    %v2278 = vld [vmem:[%s2180 + $0x308] sm:$0xff]
    %v2279 = vld [vmem:[%s2180 + $0x310] sm:$0xff]
    %v2280 = vld [vmem:[%s2180 + $0x318] sm:$0xff]
    %v2281 = vld [vmem:[%s2180 + $0x320] sm:$0xff]
    %v2282 = vld [vmem:[%s2180 + $0x328] sm:$0xff]
    %v2283 = vld [vmem:[%s2180 + $0x330] sm:$0xff]
    %v2284 = vld [vmem:[%s2180 + $0x338] sm:$0xff]
    %v2285 = vld [vmem:[%s2180 + $0x340] sm:$0xff]
    %v2286 = vld [vmem:[%s2180 + $0x348] sm:$0xff]
    %v2287 = vld [vmem:[%s2180 + $0x350] sm:$0xff]
    %v2288 = vld [vmem:[%s2180 + $0x358] sm:$0xff]
    %v2289 = vld [vmem:[%s2180 + $0x360] sm:$0xff]
    %v2290 = vld [vmem:[%s2180 + $0x368] sm:$0xff]
    %v2291 = vld [vmem:[%s2180 + $0x370] sm:$0xff]
    %v2292 = vld [vmem:[%s2180 + $0x378] sm:$0xff]
    %v2293 = vld [vmem:[%s2180 + $0x380] sm:$0xff]
    %v2294 = vld [vmem:[%s2180 + $0x388] sm:$0xff]
    %v2295 = vld [vmem:[%s2180 + $0x390] sm:$0xff]
    %v2296 = vld [vmem:[%s2180 + $0x398] sm:$0xff]
    %v2297 = vld [vmem:[%s2180 + $0x3a0] sm:$0xff]
    %v2298 = vld [vmem:[%s2180 + $0x3a8] sm:$0xff]
    %v2299 = vld [vmem:[%s2180 + $0x3b0] sm:$0xff]
    %v2300 = vld [vmem:[%s2180 + $0x3b8] sm:$0xff]
    %v2301 = vld [vmem:[%s2180 + $0x3c0] sm:$0xff]
    %v2302 = vld [vmem:[%s2180 + $0x3c8] sm:$0xff]
    %v2303 = vld [vmem:[%s2180 + $0x3d0] sm:$0xff]
    %v2304 = vld [vmem:[%s2180 + $0x3d8] sm:$0xff]
    %v2305 = vld [vmem:[%s2180 + $0x3e0] sm:$0xff]
    %v2306 = vld [vmem:[%s2180 + $0x3e8] sm:$0xff]
    %v2307 = vld [vmem:[%s2180 + $0x3f0] sm:$0xff]
    %v2308 = vld [vmem:[%s2180 + $0x3f8] sm:$0xff]
    %s2309 = scalar_lea.vmem [#allocation6], 3
    %v2310 = vld [vmem:[%s2309] ss:$4 sm:$0xf]
    %v2312 = vlaneseq
    %v2313 = vshrl.u32 %v2312, 7
    %v2314 = vsub.s32 0, %v2313
    %v2315 = vrot.slane %v2310, %v2314
    %v2316 = vlaneseq
    %v2317 = vshrl.u32 %v2316, 7
    %v2318 = vsub.s32 1, %v2317
    %v2319 = vrot.slane %v2310, %v2318
    %v2320 = vlaneseq
    %v2321 = vshrl.u32 %v2320, 7
    %v2322 = vsub.s32 2, %v2321
    %v2323 = vrot.slane %v2310, %v2322
    %v2324 = vlaneseq
    %v2325 = vshrl.u32 %v2324, 7
    %v2326 = vsub.s32 3, %v2325
    %v2327 = vrot.slane %v2310, %v2326
    %v2460 = vunpack.c.l.b16 %v2181
    %v2461 = vunpack.c.h.b16 %v2181
    %v2462 = vunpack.c.l.b16 %v2182
    %v2463 = vunpack.c.h.b16 %v2182
    %v2464 = vunpack.c.l.b16 %v2183
    %v2465 = vunpack.c.h.b16 %v2183
    %v2466 = vunpack.c.l.b16 %v2184
    %v2467 = vunpack.c.h.b16 %v2184
    %v2468 = vunpack.c.l.b16 %v2185
    %v2469 = vunpack.c.h.b16 %v2185
    %v2470 = vunpack.c.l.b16 %v2186
    %v2471 = vunpack.c.h.b16 %v2186
    %v2472 = vunpack.c.l.b16 %v2187
    %v2473 = vunpack.c.h.b16 %v2187
    %v2474 = vunpack.c.l.b16 %v2188
    %v2475 = vunpack.c.h.b16 %v2188
    %v2476 = vunpack.c.l.b16 %v2189
    %v2477 = vunpack.c.h.b16 %v2189
    %v2478 = vunpack.c.l.b16 %v2190
    %v2479 = vunpack.c.h.b16 %v2190
    %v2480 = vunpack.c.l.b16 %v2191
    %v2481 = vunpack.c.h.b16 %v2191
    %v2482 = vunpack.c.l.b16 %v2192
    %v2483 = vunpack.c.h.b16 %v2192
    %v2484 = vunpack.c.l.b16 %v2193
    %v2485 = vunpack.c.h.b16 %v2193
    %v2486 = vunpack.c.l.b16 %v2194
    %v2487 = vunpack.c.h.b16 %v2194
    %v2488 = vunpack.c.l.b16 %v2195
    %v2489 = vunpack.c.h.b16 %v2195
    %v2490 = vunpack.c.l.b16 %v2196
    %v2491 = vunpack.c.h.b16 %v2196
    %v2492 = vunpack.c.l.b16 %v2197
    %v2493 = vunpack.c.h.b16 %v2197
    %v2494 = vunpack.c.l.b16 %v2198
    %v2495 = vunpack.c.h.b16 %v2198
    %v2496 = vunpack.c.l.b16 %v2199
    %v2497 = vunpack.c.h.b16 %v2199
    %v2498 = vunpack.c.l.b16 %v2200
    %v2499 = vunpack.c.h.b16 %v2200
    %v2500 = vunpack.c.l.b16 %v2201
    %v2501 = vunpack.c.h.b16 %v2201
    %v2502 = vunpack.c.l.b16 %v2202
    %v2503 = vunpack.c.h.b16 %v2202
    %v2504 = vunpack.c.l.b16 %v2203
    %v2505 = vunpack.c.h.b16 %v2203
    %v2506 = vunpack.c.l.b16 %v2204
    %v2507 = vunpack.c.h.b16 %v2204
    %v2508 = vunpack.c.l.b16 %v2205
    %v2509 = vunpack.c.h.b16 %v2205
    %v2510 = vunpack.c.l.b16 %v2206
    %v2511 = vunpack.c.h.b16 %v2206
    %v2512 = vunpack.c.l.b16 %v2207
    %v2513 = vunpack.c.h.b16 %v2207
    %v2514 = vunpack.c.l.b16 %v2208
    %v2515 = vunpack.c.h.b16 %v2208
    %v2516 = vunpack.c.l.b16 %v2209
    %v2517 = vunpack.c.h.b16 %v2209
    %v2518 = vunpack.c.l.b16 %v2210
    %v2519 = vunpack.c.h.b16 %v2210
    %v2520 = vunpack.c.l.b16 %v2211
    %v2521 = vunpack.c.h.b16 %v2211
    %v2522 = vunpack.c.l.b16 %v2212
    %v2523 = vunpack.c.h.b16 %v2212
    %v2524 = vunpack.c.l.b16 %v2213
    %v2525 = vunpack.c.h.b16 %v2213
    %v2526 = vunpack.c.l.b16 %v2214
    %v2527 = vunpack.c.h.b16 %v2214
    %v2528 = vunpack.c.l.b16 %v2215
    %v2529 = vunpack.c.h.b16 %v2215
    %v2530 = vunpack.c.l.b16 %v2216
    %v2531 = vunpack.c.h.b16 %v2216
    %v2532 = vunpack.c.l.b16 %v2217
    %v2533 = vunpack.c.h.b16 %v2217
    %v2534 = vunpack.c.l.b16 %v2218
    %v2535 = vunpack.c.h.b16 %v2218
    %v2536 = vunpack.c.l.b16 %v2219
    %v2537 = vunpack.c.h.b16 %v2219
    %v2538 = vunpack.c.l.b16 %v2220
    %v2539 = vunpack.c.h.b16 %v2220
    %v2540 = vunpack.c.l.b16 %v2221
    %v2541 = vunpack.c.h.b16 %v2221
    %v2542 = vunpack.c.l.b16 %v2222
    %v2543 = vunpack.c.h.b16 %v2222
    %v2544 = vunpack.c.l.b16 %v2223
    %v2545 = vunpack.c.h.b16 %v2223
    %v2546 = vunpack.c.l.b16 %v2224
    %v2547 = vunpack.c.h.b16 %v2224
    %v2548 = vunpack.c.l.b16 %v2225
    %v2549 = vunpack.c.h.b16 %v2225
    %v2550 = vunpack.c.l.b16 %v2226
    %v2551 = vunpack.c.h.b16 %v2226
    %v2552 = vunpack.c.l.b16 %v2227
    %v2553 = vunpack.c.h.b16 %v2227
    %v2554 = vunpack.c.l.b16 %v2228
    %v2555 = vunpack.c.h.b16 %v2228
    %v2556 = vunpack.c.l.b16 %v2229
    %v2557 = vunpack.c.h.b16 %v2229
    %v2558 = vunpack.c.l.b16 %v2230
    %v2559 = vunpack.c.h.b16 %v2230
    %v2560 = vunpack.c.l.b16 %v2231
    %v2561 = vunpack.c.h.b16 %v2231
    %v2562 = vunpack.c.l.b16 %v2232
    %v2563 = vunpack.c.h.b16 %v2232
    %v2564 = vunpack.c.l.b16 %v2233
    %v2565 = vunpack.c.h.b16 %v2233
    %v2566 = vunpack.c.l.b16 %v2234
    %v2567 = vunpack.c.h.b16 %v2234
    %v2568 = vunpack.c.l.b16 %v2235
    %v2569 = vunpack.c.h.b16 %v2235
    %v2570 = vunpack.c.l.b16 %v2236
    %v2571 = vunpack.c.h.b16 %v2236
    %v2572 = vunpack.c.l.b16 %v2237
    %v2573 = vunpack.c.h.b16 %v2237
    %v2574 = vunpack.c.l.b16 %v2238
    %v2575 = vunpack.c.h.b16 %v2238
    %v2576 = vunpack.c.l.b16 %v2239
    %v2577 = vunpack.c.h.b16 %v2239
    %v2578 = vunpack.c.l.b16 %v2240
    %v2579 = vunpack.c.h.b16 %v2240
    %v2580 = vunpack.c.l.b16 %v2241
    %v2581 = vunpack.c.h.b16 %v2241
    %v2582 = vunpack.c.l.b16 %v2242
    %v2583 = vunpack.c.h.b16 %v2242
    %v2584 = vunpack.c.l.b16 %v2243
    %v2585 = vunpack.c.h.b16 %v2243
    %v2586 = vunpack.c.l.b16 %v2244
    %v2587 = vunpack.c.h.b16 %v2244
    %v2588 = vunpack.c.l.b16 %v2245
    %v2589 = vunpack.c.h.b16 %v2245
    %v2590 = vunpack.c.l.b16 %v2246
    %v2591 = vunpack.c.h.b16 %v2246
    %v2592 = vunpack.c.l.b16 %v2247
    %v2593 = vunpack.c.h.b16 %v2247
    %v2594 = vunpack.c.l.b16 %v2248
    %v2595 = vunpack.c.h.b16 %v2248
    %v2596 = vunpack.c.l.b16 %v2249
    %v2597 = vunpack.c.h.b16 %v2249
    %v2598 = vunpack.c.l.b16 %v2250
    %v2599 = vunpack.c.h.b16 %v2250
    %v2600 = vunpack.c.l.b16 %v2251
    %v2601 = vunpack.c.h.b16 %v2251
    %v2602 = vunpack.c.l.b16 %v2252
    %v2603 = vunpack.c.h.b16 %v2252
    %v2604 = vunpack.c.l.b16 %v2253
    %v2605 = vunpack.c.h.b16 %v2253
    %v2606 = vunpack.c.l.b16 %v2254
    %v2607 = vunpack.c.h.b16 %v2254
    %v2608 = vunpack.c.l.b16 %v2255
    %v2609 = vunpack.c.h.b16 %v2255
    %v2610 = vunpack.c.l.b16 %v2256
    %v2611 = vunpack.c.h.b16 %v2256
    %v2612 = vunpack.c.l.b16 %v2257
    %v2613 = vunpack.c.h.b16 %v2257
    %v2614 = vunpack.c.l.b16 %v2258
    %v2615 = vunpack.c.h.b16 %v2258
    %v2616 = vunpack.c.l.b16 %v2259
    %v2617 = vunpack.c.h.b16 %v2259
    %v2618 = vunpack.c.l.b16 %v2260
    %v2619 = vunpack.c.h.b16 %v2260
    %v2620 = vunpack.c.l.b16 %v2261
    %v2621 = vunpack.c.h.b16 %v2261
    %v2622 = vunpack.c.l.b16 %v2262
    %v2623 = vunpack.c.h.b16 %v2262
    %v2624 = vunpack.c.l.b16 %v2263
    %v2625 = vunpack.c.h.b16 %v2263
    %v2626 = vunpack.c.l.b16 %v2264
    %v2627 = vunpack.c.h.b16 %v2264
    %v2628 = vunpack.c.l.b16 %v2265
    %v2629 = vunpack.c.h.b16 %v2265
    %v2630 = vunpack.c.l.b16 %v2266
    %v2631 = vunpack.c.h.b16 %v2266
    %v2632 = vunpack.c.l.b16 %v2267
    %v2633 = vunpack.c.h.b16 %v2267
    %v2634 = vunpack.c.l.b16 %v2268
    %v2635 = vunpack.c.h.b16 %v2268
    %v2636 = vunpack.c.l.b16 %v2269
    %v2637 = vunpack.c.h.b16 %v2269
    %v2638 = vunpack.c.l.b16 %v2270
    %v2639 = vunpack.c.h.b16 %v2270
    %v2640 = vunpack.c.l.b16 %v2271
    %v2641 = vunpack.c.h.b16 %v2271
    %v2642 = vunpack.c.l.b16 %v2272
    %v2643 = vunpack.c.h.b16 %v2272
    %v2644 = vunpack.c.l.b16 %v2273
    %v2645 = vunpack.c.h.b16 %v2273
    %v2646 = vunpack.c.l.b16 %v2274
    %v2647 = vunpack.c.h.b16 %v2274
    %v2648 = vunpack.c.l.b16 %v2275
    %v2649 = vunpack.c.h.b16 %v2275
    %v2650 = vunpack.c.l.b16 %v2276
    %v2651 = vunpack.c.h.b16 %v2276
    %v2652 = vunpack.c.l.b16 %v2277
    %v2653 = vunpack.c.h.b16 %v2277
    %v2654 = vunpack.c.l.b16 %v2278
    %v2655 = vunpack.c.h.b16 %v2278
    %v2656 = vunpack.c.l.b16 %v2279
    %v2657 = vunpack.c.h.b16 %v2279
    %v2658 = vunpack.c.l.b16 %v2280
    %v2659 = vunpack.c.h.b16 %v2280
    %v2660 = vunpack.c.l.b16 %v2281
    %v2661 = vunpack.c.h.b16 %v2281
    %v2662 = vunpack.c.l.b16 %v2282
    %v2663 = vunpack.c.h.b16 %v2282
    %v2664 = vunpack.c.l.b16 %v2283
    %v2665 = vunpack.c.h.b16 %v2283
    %v2666 = vunpack.c.l.b16 %v2284
    %v2667 = vunpack.c.h.b16 %v2284
    %v2668 = vunpack.c.l.b16 %v2285
    %v2669 = vunpack.c.h.b16 %v2285
    %v2670 = vunpack.c.l.b16 %v2286
    %v2671 = vunpack.c.h.b16 %v2286
    %v2672 = vunpack.c.l.b16 %v2287
    %v2673 = vunpack.c.h.b16 %v2287
    %v2674 = vunpack.c.l.b16 %v2288
    %v2675 = vunpack.c.h.b16 %v2288
    %v2676 = vunpack.c.l.b16 %v2289
    %v2677 = vunpack.c.h.b16 %v2289
    %v2678 = vunpack.c.l.b16 %v2290
    %v2679 = vunpack.c.h.b16 %v2290
    %v2680 = vunpack.c.l.b16 %v2291
    %v2681 = vunpack.c.h.b16 %v2291
    %v2682 = vunpack.c.l.b16 %v2292
    %v2683 = vunpack.c.h.b16 %v2292
    %v2684 = vunpack.c.l.b16 %v2293
    %v2685 = vunpack.c.h.b16 %v2293
    %v2686 = vunpack.c.l.b16 %v2294
    %v2687 = vunpack.c.h.b16 %v2294
    %v2688 = vunpack.c.l.b16 %v2295
    %v2689 = vunpack.c.h.b16 %v2295
    %v2690 = vunpack.c.l.b16 %v2296
    %v2691 = vunpack.c.h.b16 %v2296
    %v2692 = vunpack.c.l.b16 %v2297
    %v2693 = vunpack.c.h.b16 %v2297
    %v2694 = vunpack.c.l.b16 %v2298
    %v2695 = vunpack.c.h.b16 %v2298
    %v2696 = vunpack.c.l.b16 %v2299
    %v2697 = vunpack.c.h.b16 %v2299
    %v2698 = vunpack.c.l.b16 %v2300
    %v2699 = vunpack.c.h.b16 %v2300
    %v2700 = vunpack.c.l.b16 %v2301
    %v2701 = vunpack.c.h.b16 %v2301
    %v2702 = vunpack.c.l.b16 %v2302
    %v2703 = vunpack.c.h.b16 %v2302
    %v2704 = vunpack.c.l.b16 %v2303
    %v2705 = vunpack.c.h.b16 %v2303
    %v2706 = vunpack.c.l.b16 %v2304
    %v2707 = vunpack.c.h.b16 %v2304
    %v2708 = vunpack.c.l.b16 %v2305
    %v2709 = vunpack.c.h.b16 %v2305
    %v2710 = vunpack.c.l.b16 %v2306
    %v2711 = vunpack.c.h.b16 %v2306
    %v2712 = vunpack.c.l.b16 %v2307
    %v2713 = vunpack.c.h.b16 %v2307
    %v2714 = vunpack.c.l.b16 %v2308
    %v2715 = vunpack.c.h.b16 %v2308
    %v2716 = vpack.c.b16 %v2464, %v2460
    %v2717 = vpack.c.b16 %v2465, %v2461
    %v2718 = vpack.c.b16 %v2466, %v2462
    %v2719 = vpack.c.b16 %v2467, %v2463
    %v2720 = vpack.c.b16 %v2472, %v2468
    %v2721 = vpack.c.b16 %v2473, %v2469
    %v2722 = vpack.c.b16 %v2474, %v2470
    %v2723 = vpack.c.b16 %v2475, %v2471
    %v2724 = vpack.c.b16 %v2480, %v2476
    %v2725 = vpack.c.b16 %v2481, %v2477
    %v2726 = vpack.c.b16 %v2482, %v2478
    %v2727 = vpack.c.b16 %v2483, %v2479
    %v2728 = vpack.c.b16 %v2488, %v2484
    %v2729 = vpack.c.b16 %v2489, %v2485
    %v2730 = vpack.c.b16 %v2490, %v2486
    %v2731 = vpack.c.b16 %v2491, %v2487
    %v2732 = vpack.c.b16 %v2496, %v2492
    %v2733 = vpack.c.b16 %v2497, %v2493
    %v2734 = vpack.c.b16 %v2498, %v2494
    %v2735 = vpack.c.b16 %v2499, %v2495
    %v2736 = vpack.c.b16 %v2504, %v2500
    %v2737 = vpack.c.b16 %v2505, %v2501
    %v2738 = vpack.c.b16 %v2506, %v2502
    %v2739 = vpack.c.b16 %v2507, %v2503
    %v2740 = vpack.c.b16 %v2512, %v2508
    %v2741 = vpack.c.b16 %v2513, %v2509
    %v2742 = vpack.c.b16 %v2514, %v2510
    %v2743 = vpack.c.b16 %v2515, %v2511
    %v2744 = vpack.c.b16 %v2520, %v2516
    %v2745 = vpack.c.b16 %v2521, %v2517
    %v2746 = vpack.c.b16 %v2522, %v2518
    %v2747 = vpack.c.b16 %v2523, %v2519
    %v2748 = vpack.c.b16 %v2528, %v2524
    %v2749 = vpack.c.b16 %v2529, %v2525
    %v2750 = vpack.c.b16 %v2530, %v2526
    %v2751 = vpack.c.b16 %v2531, %v2527
    %v2752 = vpack.c.b16 %v2536, %v2532
    %v2753 = vpack.c.b16 %v2537, %v2533
    %v2754 = vpack.c.b16 %v2538, %v2534
    %v2755 = vpack.c.b16 %v2539, %v2535
    %v2756 = vpack.c.b16 %v2544, %v2540
    %v2757 = vpack.c.b16 %v2545, %v2541
    %v2758 = vpack.c.b16 %v2546, %v2542
    %v2759 = vpack.c.b16 %v2547, %v2543
    %v2760 = vpack.c.b16 %v2552, %v2548
    %v2761 = vpack.c.b16 %v2553, %v2549
    %v2762 = vpack.c.b16 %v2554, %v2550
    %v2763 = vpack.c.b16 %v2555, %v2551
    %v2764 = vpack.c.b16 %v2560, %v2556
    %v2765 = vpack.c.b16 %v2561, %v2557
    %v2766 = vpack.c.b16 %v2562, %v2558
    %v2767 = vpack.c.b16 %v2563, %v2559
    %v2768 = vpack.c.b16 %v2568, %v2564
    %v2769 = vpack.c.b16 %v2569, %v2565
    %v2770 = vpack.c.b16 %v2570, %v2566
    %v2771 = vpack.c.b16 %v2571, %v2567
    %v2772 = vpack.c.b16 %v2576, %v2572
    %v2773 = vpack.c.b16 %v2577, %v2573
    %v2774 = vpack.c.b16 %v2578, %v2574
    %v2775 = vpack.c.b16 %v2579, %v2575
    %v2776 = vpack.c.b16 %v2584, %v2580
    %v2777 = vpack.c.b16 %v2585, %v2581
    %v2778 = vpack.c.b16 %v2586, %v2582
    %v2779 = vpack.c.b16 %v2587, %v2583
    %v2780 = vpack.c.b16 %v2592, %v2588
    %v2781 = vpack.c.b16 %v2593, %v2589
    %v2782 = vpack.c.b16 %v2594, %v2590
    %v2783 = vpack.c.b16 %v2595, %v2591
    %v2784 = vpack.c.b16 %v2600, %v2596
    %v2785 = vpack.c.b16 %v2601, %v2597
    %v2786 = vpack.c.b16 %v2602, %v2598
    %v2787 = vpack.c.b16 %v2603, %v2599
    %v2788 = vpack.c.b16 %v2608, %v2604
    %v2789 = vpack.c.b16 %v2609, %v2605
    %v2790 = vpack.c.b16 %v2610, %v2606
    %v2791 = vpack.c.b16 %v2611, %v2607
    %v2792 = vpack.c.b16 %v2616, %v2612
    %v2793 = vpack.c.b16 %v2617, %v2613
    %v2794 = vpack.c.b16 %v2618, %v2614
    %v2795 = vpack.c.b16 %v2619, %v2615
    %v2796 = vpack.c.b16 %v2624, %v2620
    %v2797 = vpack.c.b16 %v2625, %v2621
    %v2798 = vpack.c.b16 %v2626, %v2622
    %v2799 = vpack.c.b16 %v2627, %v2623
    %v2800 = vpack.c.b16 %v2632, %v2628
    %v2801 = vpack.c.b16 %v2633, %v2629
    %v2802 = vpack.c.b16 %v2634, %v2630
    %v2803 = vpack.c.b16 %v2635, %v2631
    %v2804 = vpack.c.b16 %v2640, %v2636
    %v2805 = vpack.c.b16 %v2641, %v2637
    %v2806 = vpack.c.b16 %v2642, %v2638
    %v2807 = vpack.c.b16 %v2643, %v2639
    %v2808 = vpack.c.b16 %v2648, %v2644
    %v2809 = vpack.c.b16 %v2649, %v2645
    %v2810 = vpack.c.b16 %v2650, %v2646
    %v2811 = vpack.c.b16 %v2651, %v2647
    %v2812 = vpack.c.b16 %v2656, %v2652
    %v2813 = vpack.c.b16 %v2657, %v2653
    %v2814 = vpack.c.b16 %v2658, %v2654
    %v2815 = vpack.c.b16 %v2659, %v2655
    %v2816 = vpack.c.b16 %v2664, %v2660
    %v2817 = vpack.c.b16 %v2665, %v2661
    %v2818 = vpack.c.b16 %v2666, %v2662
    %v2819 = vpack.c.b16 %v2667, %v2663
    %v2820 = vpack.c.b16 %v2672, %v2668
    %v2821 = vpack.c.b16 %v2673, %v2669
    %v2822 = vpack.c.b16 %v2674, %v2670
    %v2823 = vpack.c.b16 %v2675, %v2671
    %v2824 = vpack.c.b16 %v2680, %v2676
    %v2825 = vpack.c.b16 %v2681, %v2677
    %v2826 = vpack.c.b16 %v2682, %v2678
    %v2827 = vpack.c.b16 %v2683, %v2679
    %v2828 = vpack.c.b16 %v2688, %v2684
    %v2829 = vpack.c.b16 %v2689, %v2685
    %v2830 = vpack.c.b16 %v2690, %v2686
    %v2831 = vpack.c.b16 %v2691, %v2687
    %v2832 = vpack.c.b16 %v2696, %v2692
    %v2833 = vpack.c.b16 %v2697, %v2693
    %v2834 = vpack.c.b16 %v2698, %v2694
    %v2835 = vpack.c.b16 %v2699, %v2695
    %v2836 = vpack.c.b16 %v2704, %v2700
    %v2837 = vpack.c.b16 %v2705, %v2701
    %v2838 = vpack.c.b16 %v2706, %v2702
    %v2839 = vpack.c.b16 %v2707, %v2703
    %v2840 = vpack.c.b16 %v2712, %v2708
    %v2841 = vpack.c.b16 %v2713, %v2709
    %v2842 = vpack.c.b16 %v2714, %v2710
    %v2843 = vpack.c.b16 %v2715, %v2711
    %2972 = vmatprep.subr.bf16.mxu0 %v2717
    %2973 = vmatpush1.bf16.msra.mxu0 %v2716
    %2974 = vmatprep.subr.bf16.mxu0 %v2721
    %2975 = vmatpush1.bf16.msra.mxu0 %v2720
    %2976 = vmatprep.subr.bf16.mxu0 %v2725
    %2977 = vmatpush1.bf16.msra.mxu0 %v2724
    %2978 = vmatprep.subr.bf16.mxu0 %v2729
    %2979 = vmatpush1.bf16.msra.mxu0 %v2728
    %2980 = vmatprep.subr.bf16.mxu0 %v2733
    %2981 = vmatpush1.bf16.msra.mxu0 %v2732
    %2982 = vmatprep.subr.bf16.mxu0 %v2737
    %2983 = vmatpush1.bf16.msra.mxu0 %v2736
    %2984 = vmatprep.subr.bf16.mxu0 %v2741
    %2985 = vmatpush1.bf16.msra.mxu0 %v2740
    %2986 = vmatprep.subr.bf16.mxu0 %v2745
    %2987 = vmatpush1.bf16.msra.mxu0 %v2744
    %2988 = vmatprep.subr.bf16.mxu0 %v2749
    %2989 = vmatpush1.bf16.msra.mxu0 %v2748
    %2990 = vmatprep.subr.bf16.mxu0 %v2753
    %2991 = vmatpush1.bf16.msra.mxu0 %v2752
    %2992 = vmatprep.subr.bf16.mxu0 %v2757
    %2993 = vmatpush1.bf16.msra.mxu0 %v2756
    %2994 = vmatprep.subr.bf16.mxu0 %v2761
    %2995 = vmatpush1.bf16.msra.mxu0 %v2760
    %2996 = vmatprep.subr.bf16.mxu0 %v2765
    %2997 = vmatpush1.bf16.msra.mxu0 %v2764
    %2998 = vmatprep.subr.bf16.mxu0 %v2769
    %2999 = vmatpush1.bf16.msra.mxu0 %v2768
    %3000 = vmatprep.subr.bf16.mxu0 %v2773
    %3001 = vmatpush1.bf16.msra.mxu0 %v2772
    %3002 = vmatprep.subr.bf16.mxu0 %v2777
    %3003 = vmatpush1.bf16.msra.mxu0 %v2776
    %3004 = vmatprep.mubr.bf16.mxu0 %v2177
    %3005 = vmatmul.mubr.bf16.gmra.mrb[0].mxu0 %v2176
    %v3006 = vpop.f32.mrb[0].mxu0
    %v3007 = vadd.f32 %v2315, %v3006
    %v3008 = vpop.f32.mrb[0].mxu0
    %v3009 = vadd.f32 %v2319, %v3008
    %v3010 = vpop.f32.mrb[0].mxu0
    %v3011 = vpop.f32.mrb[0].mxu0
    %3012 = vdwg.mxu0
    %3013 = vmatprep.subr.bf16.mxu0 %v2781
    %3014 = vmatpush1.bf16.msra.mxu0 %v2780
    %3015 = vmatprep.subr.bf16.mxu0 %v2785
    %3016 = vmatpush1.bf16.msra.mxu0 %v2784
    %3017 = vmatprep.subr.bf16.mxu0 %v2789
    %3018 = vmatpush1.bf16.msra.mxu0 %v2788
    %3019 = vmatprep.subr.bf16.mxu0 %v2793
    %3020 = vmatpush1.bf16.msra.mxu0 %v2792
    %3021 = vmatprep.subr.bf16.mxu0 %v2797
    %3022 = vmatpush1.bf16.msra.mxu0 %v2796
    %3023 = vmatprep.subr.bf16.mxu0 %v2801
    %3024 = vmatpush1.bf16.msra.mxu0 %v2800
    %3025 = vmatprep.subr.bf16.mxu0 %v2805
    %3026 = vmatpush1.bf16.msra.mxu0 %v2804
    %3027 = vmatprep.subr.bf16.mxu0 %v2809
    %3028 = vmatpush1.bf16.msra.mxu0 %v2808
    %3029 = vmatprep.subr.bf16.mxu0 %v2813
    %3030 = vmatpush1.bf16.msra.mxu0 %v2812
    %3031 = vmatprep.subr.bf16.mxu0 %v2817
    %3032 = vmatpush1.bf16.msra.mxu0 %v2816
    %3033 = vmatprep.subr.bf16.mxu0 %v2821
    %3034 = vmatpush1.bf16.msra.mxu0 %v2820
    %3035 = vmatprep.subr.bf16.mxu0 %v2825
    %3036 = vmatpush1.bf16.msra.mxu0 %v2824
    %3037 = vmatprep.subr.bf16.mxu0 %v2829
    %3038 = vmatpush1.bf16.msra.mxu0 %v2828
    %3039 = vmatprep.subr.bf16.mxu0 %v2833
    %3040 = vmatpush1.bf16.msra.mxu0 %v2832
    %3041 = vmatprep.subr.bf16.mxu0 %v2837
    %3042 = vmatpush1.bf16.msra.mxu0 %v2836
    %3043 = vmatprep.subr.bf16.mxu0 %v2841
    %3044 = vmatpush1.bf16.msra.mxu0 %v2840
    %3045 = vmatprep.mubr.bf16.mxu0 %v2179
    %3046 = vmatmul.mubr.bf16.gmra.mrb[0].mxu0 %v2178
    %v3047 = vpop.f32.mrb[0].mxu0
    %v3048 = vadd.f32 %v3007, %v3047
    %v3049 = vpop.f32.mrb[0].mxu0
    %v3050 = vadd.f32 %v3009, %v3049
    %v3051 = vpop.f32.mrb[0].mxu0
    %v3052 = vpop.f32.mrb[0].mxu0
    %3053 = vdwg.mxu0
    %3054 = vmatprep.subr.bf16.mxu0 %v2719
    %3055 = vmatpush1.bf16.msra.mxu0 %v2718
    %3056 = vmatprep.subr.bf16.mxu0 %v2723
    %3057 = vmatpush1.bf16.msra.mxu0 %v2722
    %3058 = vmatprep.subr.bf16.mxu0 %v2727
    %3059 = vmatpush1.bf16.msra.mxu0 %v2726
    %3060 = vmatprep.subr.bf16.mxu0 %v2731
    %3061 = vmatpush1.bf16.msra.mxu0 %v2730
    %3062 = vmatprep.subr.bf16.mxu0 %v2735
    %3063 = vmatpush1.bf16.msra.mxu0 %v2734
    %3064 = vmatprep.subr.bf16.mxu0 %v2739
    %3065 = vmatpush1.bf16.msra.mxu0 %v2738
    %3066 = vmatprep.subr.bf16.mxu0 %v2743
    %3067 = vmatpush1.bf16.msra.mxu0 %v2742
    %3068 = vmatprep.subr.bf16.mxu0 %v2747
    %3069 = vmatpush1.bf16.msra.mxu0 %v2746
    %3070 = vmatprep.subr.bf16.mxu0 %v2751
    %3071 = vmatpush1.bf16.msra.mxu0 %v2750
    %3072 = vmatprep.subr.bf16.mxu0 %v2755
    %3073 = vmatpush1.bf16.msra.mxu0 %v2754
    %3074 = vmatprep.subr.bf16.mxu0 %v2759
    %3075 = vmatpush1.bf16.msra.mxu0 %v2758
    %3076 = vmatprep.subr.bf16.mxu0 %v2763
    %3077 = vmatpush1.bf16.msra.mxu0 %v2762
    %3078 = vmatprep.subr.bf16.mxu0 %v2767
    %3079 = vmatpush1.bf16.msra.mxu0 %v2766
    %3080 = vmatprep.subr.bf16.mxu0 %v2771
    %3081 = vmatpush1.bf16.msra.mxu0 %v2770
    %3082 = vmatprep.subr.bf16.mxu0 %v2775
    %3083 = vmatpush1.bf16.msra.mxu0 %v2774
    %3084 = vmatprep.subr.bf16.mxu0 %v2779
    %3085 = vmatpush1.bf16.msra.mxu0 %v2778
    %3086 = vmatprep.mubr.bf16.mxu0 %v2177
    %3087 = vmatmul.mubr.bf16.gmra.mrb[0].mxu0 %v2176
    %v3088 = vpop.f32.mrb[0].mxu0
    %v3089 = vadd.f32 %v2323, %v3088
    %v3090 = vpop.f32.mrb[0].mxu0
    %v3091 = vadd.f32 %v2327, %v3090
    %v3092 = vpop.f32.mrb[0].mxu0
    %v3093 = vpop.f32.mrb[0].mxu0
    %3094 = vdwg.mxu0
    %3095 = vmatprep.subr.bf16.mxu0 %v2783
    %3096 = vmatpush1.bf16.msra.mxu0 %v2782
    %3097 = vmatprep.subr.bf16.mxu0 %v2787
    %3098 = vmatpush1.bf16.msra.mxu0 %v2786
    %3099 = vmatprep.subr.bf16.mxu0 %v2791
    %3100 = vmatpush1.bf16.msra.mxu0 %v2790
    %3101 = vmatprep.subr.bf16.mxu0 %v2795
    %3102 = vmatpush1.bf16.msra.mxu0 %v2794
    %3103 = vmatprep.subr.bf16.mxu0 %v2799
    %3104 = vmatpush1.bf16.msra.mxu0 %v2798
    %3105 = vmatprep.subr.bf16.mxu0 %v2803
    %3106 = vmatpush1.bf16.msra.mxu0 %v2802
    %3107 = vmatprep.subr.bf16.mxu0 %v2807
    %3108 = vmatpush1.bf16.msra.mxu0 %v2806
    %3109 = vmatprep.subr.bf16.mxu0 %v2811
    %3110 = vmatpush1.bf16.msra.mxu0 %v2810
    %3111 = vmatprep.subr.bf16.mxu0 %v2815
    %3112 = vmatpush1.bf16.msra.mxu0 %v2814
    %3113 = vmatprep.subr.bf16.mxu0 %v2819
    %3114 = vmatpush1.bf16.msra.mxu0 %v2818
    %3115 = vmatprep.subr.bf16.mxu0 %v2823
    %3116 = vmatpush1.bf16.msra.mxu0 %v2822
    %3117 = vmatprep.subr.bf16.mxu0 %v2827
    %3118 = vmatpush1.bf16.msra.mxu0 %v2826
    %3119 = vmatprep.subr.bf16.mxu0 %v2831
    %3120 = vmatpush1.bf16.msra.mxu0 %v2830
    %3121 = vmatprep.subr.bf16.mxu0 %v2835
    %3122 = vmatpush1.bf16.msra.mxu0 %v2834
    %3123 = vmatprep.subr.bf16.mxu0 %v2839
    %3124 = vmatpush1.bf16.msra.mxu0 %v2838
    %3125 = vmatprep.subr.bf16.mxu0 %v2843
    %3126 = vmatpush1.bf16.msra.mxu0 %v2842
    %3127 = vmatprep.mubr.bf16.mxu0 %v2179
    %3128 = vmatmul.mubr.bf16.gmra.mrb[0].mxu0 %v2178
    %v3129 = vpop.f32.mrb[0].mxu0
    %v3130 = vadd.f32 %v3089, %v3129
    %v3131 = vpop.f32.mrb[0].mxu0
    %v3132 = vadd.f32 %v3091, %v3131
    %v3133 = vpop.f32.mrb[0].mxu0
    %v3134 = vpop.f32.mrb[0].mxu0
    %3135 = vdwg.mxu0
    %v3136 = vmax.f32 %v3048, 0.0
    %v3137 = vmax.f32 %v3050, 0.0
    %v3138 = vmax.f32 %v3130, 0.0
    %v3139 = vmax.f32 %v3132, 0.0
    %v3140 = vpack.c.bf16 %v3136, %v3136
    %v3141 = vpack.c.bf16 %v3137, %v3137
    %v3142 = vpack.c.bf16 %v3138, %v3138
    %v3143 = vpack.c.bf16 %v3139, %v3139
    %v3144 = vld [vmem:[#allocation7] sm:$0xf]
    %v3145 = vld [vmem:[#allocation7 + $0x4] sm:$0xf]
    %v3146 = vld [vmem:[#allocation7 + $0x8] sm:$0xf]
    %v3147 = vld [vmem:[#allocation7 + $0xc] sm:$0xf]
    %v3148 = vld [vmem:[#allocation7 + $0x10] sm:$0xf]
    %v3149 = vld [vmem:[#allocation7 + $0x14] sm:$0xf]
    %v3150 = vld [vmem:[#allocation7 + $0x18] sm:$0xf]
    %v3151 = vld [vmem:[#allocation7 + $0x1c] sm:$0xf]
    %v3152 = vld [vmem:[#allocation7 + $0x20] sm:$0xf]
    %v3153 = vld [vmem:[#allocation7 + $0x24] sm:$0xf]
    %v3154 = vld [vmem:[#allocation7 + $0x28] sm:$0xf]
    %v3155 = vld [vmem:[#allocation7 + $0x2c] sm:$0xf]
    %v3156 = vld [vmem:[#allocation7 + $0x30] sm:$0xf]
    %v3157 = vld [vmem:[#allocation7 + $0x34] sm:$0xf]
    %v3158 = vld [vmem:[#allocation7 + $0x38] sm:$0xf]
    %v3159 = vld [vmem:[#allocation7 + $0x3c] sm:$0xf]
    %v3160 = vld [vmem:[#allocation7 + $0x40] sm:$0xf]
    %v3161 = vld [vmem:[#allocation7 + $0x44] sm:$0xf]
    %v3162 = vld [vmem:[#allocation7 + $0x48] sm:$0xf]
    %v3163 = vld [vmem:[#allocation7 + $0x4c] sm:$0xf]
    %v3164 = vld [vmem:[#allocation7 + $0x50] sm:$0xf]
    %v3165 = vld [vmem:[#allocation7 + $0x54] sm:$0xf]
    %v3166 = vld [vmem:[#allocation7 + $0x58] sm:$0xf]
    %v3167 = vld [vmem:[#allocation7 + $0x5c] sm:$0xf]
    %v3168 = vld [vmem:[#allocation7 + $0x60] sm:$0xf]
    %v3169 = vld [vmem:[#allocation7 + $0x64] sm:$0xf]
    %v3170 = vld [vmem:[#allocation7 + $0x68] sm:$0xf]
    %v3171 = vld [vmem:[#allocation7 + $0x6c] sm:$0xf]
    %v3172 = vld [vmem:[#allocation7 + $0x70] sm:$0xf]
    %v3173 = vld [vmem:[#allocation7 + $0x74] sm:$0xf]
    %v3174 = vld [vmem:[#allocation7 + $0x78] sm:$0xf]
    %v3175 = vld [vmem:[#allocation7 + $0x7c] sm:$0xf]
    %v3176 = vld [vmem:[#allocation7 + $0x80] sm:$0xf]
    %v3177 = vld [vmem:[#allocation7 + $0x84] sm:$0xf]
    %v3178 = vld [vmem:[#allocation7 + $0x88] sm:$0xf]
    %v3179 = vld [vmem:[#allocation7 + $0x8c] sm:$0xf]
    %v3180 = vld [vmem:[#allocation7 + $0x90] sm:$0xf]
    %v3181 = vld [vmem:[#allocation7 + $0x94] sm:$0xf]
    %v3182 = vld [vmem:[#allocation7 + $0x98] sm:$0xf]
    %v3183 = vld [vmem:[#allocation7 + $0x9c] sm:$0xf]
    %v3184 = vld [vmem:[#allocation7 + $0xa0] sm:$0xf]
    %v3185 = vld [vmem:[#allocation7 + $0xa4] sm:$0xf]
    %v3186 = vld [vmem:[#allocation7 + $0xa8] sm:$0xf]
    %v3187 = vld [vmem:[#allocation7 + $0xac] sm:$0xf]
    %v3188 = vld [vmem:[#allocation7 + $0xb0] sm:$0xf]
    %v3189 = vld [vmem:[#allocation7 + $0xb4] sm:$0xf]
    %v3190 = vld [vmem:[#allocation7 + $0xb8] sm:$0xf]
    %v3191 = vld [vmem:[#allocation7 + $0xbc] sm:$0xf]
    %v3192 = vld [vmem:[#allocation7 + $0xc0] sm:$0xf]
    %v3193 = vld [vmem:[#allocation7 + $0xc4] sm:$0xf]
    %v3194 = vld [vmem:[#allocation7 + $0xc8] sm:$0xf]
    %v3195 = vld [vmem:[#allocation7 + $0xcc] sm:$0xf]
    %v3196 = vld [vmem:[#allocation7 + $0xd0] sm:$0xf]
    %v3197 = vld [vmem:[#allocation7 + $0xd4] sm:$0xf]
    %v3198 = vld [vmem:[#allocation7 + $0xd8] sm:$0xf]
    %v3199 = vld [vmem:[#allocation7 + $0xdc] sm:$0xf]
    %v3200 = vld [vmem:[#allocation7 + $0xe0] sm:$0xf]
    %v3201 = vld [vmem:[#allocation7 + $0xe4] sm:$0xf]
    %v3202 = vld [vmem:[#allocation7 + $0xe8] sm:$0xf]
    %v3203 = vld [vmem:[#allocation7 + $0xec] sm:$0xf]
    %v3204 = vld [vmem:[#allocation7 + $0xf0] sm:$0xf]
    %v3205 = vld [vmem:[#allocation7 + $0xf4] sm:$0xf]
    %v3206 = vld [vmem:[#allocation7 + $0xf8] sm:$0xf]
    %v3207 = vld [vmem:[#allocation7 + $0xfc] sm:$0xf]
    %v3208 = vld [vmem:[#allocation9] sm:$0x1]
    %v3210 = vlaneseq
    %v3211 = vshrl.u32 %v3210, 7
    %v3212 = vsub.s32 0, %v3211
    %v3213 = vrot.slane %v3208, %v3212
    %v3279 = vunpack.c.l.b16 %v3144
    %v3280 = vunpack.c.l.b16 %v3145
    %v3281 = vunpack.c.l.b16 %v3146
    %v3282 = vunpack.c.l.b16 %v3147
    %v3283 = vunpack.c.l.b16 %v3148
    %v3284 = vunpack.c.l.b16 %v3149
    %v3285 = vunpack.c.l.b16 %v3150
    %v3286 = vunpack.c.l.b16 %v3151
    %v3287 = vunpack.c.l.b16 %v3152
    %v3288 = vunpack.c.l.b16 %v3153
    %v3289 = vunpack.c.l.b16 %v3154
    %v3290 = vunpack.c.l.b16 %v3155
    %v3291 = vunpack.c.l.b16 %v3156
    %v3292 = vunpack.c.l.b16 %v3157
    %v3293 = vunpack.c.l.b16 %v3158
    %v3294 = vunpack.c.l.b16 %v3159
    %v3295 = vunpack.c.l.b16 %v3160
    %v3296 = vunpack.c.l.b16 %v3161
    %v3297 = vunpack.c.l.b16 %v3162
    %v3298 = vunpack.c.l.b16 %v3163
    %v3299 = vunpack.c.l.b16 %v3164
    %v3300 = vunpack.c.l.b16 %v3165
    %v3301 = vunpack.c.l.b16 %v3166
    %v3302 = vunpack.c.l.b16 %v3167
    %v3303 = vunpack.c.l.b16 %v3168
    %v3304 = vunpack.c.l.b16 %v3169
    %v3305 = vunpack.c.l.b16 %v3170
    %v3306 = vunpack.c.l.b16 %v3171
    %v3307 = vunpack.c.l.b16 %v3172
    %v3308 = vunpack.c.l.b16 %v3173
    %v3309 = vunpack.c.l.b16 %v3174
    %v3310 = vunpack.c.l.b16 %v3175
    %v3311 = vunpack.c.l.b16 %v3176
    %v3312 = vunpack.c.l.b16 %v3177
    %v3313 = vunpack.c.l.b16 %v3178
    %v3314 = vunpack.c.l.b16 %v3179
    %v3315 = vunpack.c.l.b16 %v3180
    %v3316 = vunpack.c.l.b16 %v3181
    %v3317 = vunpack.c.l.b16 %v3182
    %v3318 = vunpack.c.l.b16 %v3183
    %v3319 = vunpack.c.l.b16 %v3184
    %v3320 = vunpack.c.l.b16 %v3185
    %v3321 = vunpack.c.l.b16 %v3186
    %v3322 = vunpack.c.l.b16 %v3187
    %v3323 = vunpack.c.l.b16 %v3188
    %v3324 = vunpack.c.l.b16 %v3189
    %v3325 = vunpack.c.l.b16 %v3190
    %v3326 = vunpack.c.l.b16 %v3191
    %v3327 = vunpack.c.l.b16 %v3192
    %v3328 = vunpack.c.l.b16 %v3193
    %v3329 = vunpack.c.l.b16 %v3194
    %v3330 = vunpack.c.l.b16 %v3195
    %v3331 = vunpack.c.l.b16 %v3196
    %v3332 = vunpack.c.l.b16 %v3197
    %v3333 = vunpack.c.l.b16 %v3198
    %v3334 = vunpack.c.l.b16 %v3199
    %v3335 = vunpack.c.l.b16 %v3200
    %v3336 = vunpack.c.l.b16 %v3201
    %v3337 = vunpack.c.l.b16 %v3202
    %v3338 = vunpack.c.l.b16 %v3203
    %v3339 = vunpack.c.l.b16 %v3204
    %v3340 = vunpack.c.l.b16 %v3205
    %v3341 = vunpack.c.l.b16 %v3206
    %v3342 = vunpack.c.l.b16 %v3207
    %v3343 = vpack.c.b16 %v3280, %v3279
    %v3344 = vpack.c.b16 %v3282, %v3281
    %v3345 = vpack.c.b16 %v3284, %v3283
    %v3346 = vpack.c.b16 %v3286, %v3285
    %v3347 = vpack.c.b16 %v3288, %v3287
    %v3348 = vpack.c.b16 %v3290, %v3289
    %v3349 = vpack.c.b16 %v3292, %v3291
    %v3350 = vpack.c.b16 %v3294, %v3293
    %v3351 = vpack.c.b16 %v3296, %v3295
    %v3352 = vpack.c.b16 %v3298, %v3297
    %v3353 = vpack.c.b16 %v3300, %v3299
    %v3354 = vpack.c.b16 %v3302, %v3301
    %v3355 = vpack.c.b16 %v3304, %v3303
    %v3356 = vpack.c.b16 %v3306, %v3305
    %v3357 = vpack.c.b16 %v3308, %v3307
    %v3358 = vpack.c.b16 %v3310, %v3309
    %v3359 = vpack.c.b16 %v3312, %v3311
    %v3360 = vpack.c.b16 %v3314, %v3313
    %v3361 = vpack.c.b16 %v3316, %v3315
    %v3362 = vpack.c.b16 %v3318, %v3317
    %v3363 = vpack.c.b16 %v3320, %v3319
    %v3364 = vpack.c.b16 %v3322, %v3321
    %v3365 = vpack.c.b16 %v3324, %v3323
    %v3366 = vpack.c.b16 %v3326, %v3325
    %v3367 = vpack.c.b16 %v3328, %v3327
    %v3368 = vpack.c.b16 %v3330, %v3329
    %v3369 = vpack.c.b16 %v3332, %v3331
    %v3370 = vpack.c.b16 %v3334, %v3333
    %v3371 = vpack.c.b16 %v3336, %v3335
    %v3372 = vpack.c.b16 %v3338, %v3337
    %v3373 = vpack.c.b16 %v3340, %v3339
    %v3374 = vpack.c.b16 %v3342, %v3341
    %3407 = vmatprep.subr.bf16.mxu0 0
    %3408 = vmatpush1.bf16.msra.mxu0 %v3343
    %3409 = vmatprep.subr.bf16.mxu0 0
    %3410 = vmatpush1.bf16.msra.mxu0 %v3344
    %3411 = vmatprep.subr.bf16.mxu0 0
    %3412 = vmatpush1.bf16.msra.mxu0 %v3345
    %3413 = vmatprep.subr.bf16.mxu0 0
    %3414 = vmatpush1.bf16.msra.mxu0 %v3346
    %3415 = vmatprep.subr.bf16.mxu0 0
    %3416 = vmatpush1.bf16.msra.mxu0 %v3347
    %3417 = vmatprep.subr.bf16.mxu0 0
    %3418 = vmatpush1.bf16.msra.mxu0 %v3348
    %3419 = vmatprep.subr.bf16.mxu0 0
    %3420 = vmatpush1.bf16.msra.mxu0 %v3349
    %3421 = vmatprep.subr.bf16.mxu0 0
    %3422 = vmatpush1.bf16.msra.mxu0 %v3350
    %3423 = vmatprep.subr.bf16.mxu0 0
    %3424 = vmatpush1.bf16.msra.mxu0 %v3351
    %3425 = vmatprep.subr.bf16.mxu0 0
    %3426 = vmatpush1.bf16.msra.mxu0 %v3352
    %3427 = vmatprep.subr.bf16.mxu0 0
    %3428 = vmatpush1.bf16.msra.mxu0 %v3353
    %3429 = vmatprep.subr.bf16.mxu0 0
    %3430 = vmatpush1.bf16.msra.mxu0 %v3354
    %3431 = vmatprep.subr.bf16.mxu0 0
    %3432 = vmatpush1.bf16.msra.mxu0 %v3355
    %3433 = vmatprep.subr.bf16.mxu0 0
    %3434 = vmatpush1.bf16.msra.mxu0 %v3356
    %3435 = vmatprep.subr.bf16.mxu0 0
    %3436 = vmatpush1.bf16.msra.mxu0 %v3357
    %3437 = vmatprep.subr.bf16.mxu0 0
    %3438 = vmatpush1.bf16.msra.mxu0 %v3358
    %3439 = vmatprep.mubr.bf16.mxu0 %v3141
    %3440 = vmatmul.mubr.bf16.gmra.mrb[0].mxu0 %v3140
    %v3441 = vpop.f32.mrb[0].mxu0
    %v3442 = vadd.f32 %v3213, %v3441
    %v3443 = vpop.f32.mrb[0].mxu0
    %v3444 = vpop.f32.mrb[0].mxu0
    %v3445 = vpop.f32.mrb[0].mxu0
    %3446 = vdwg.mxu0
    %3447 = vmatprep.subr.bf16.mxu0 0
    %3448 = vmatpush1.bf16.msra.mxu0 %v3359
    %3449 = vmatprep.subr.bf16.mxu0 0
    %3450 = vmatpush1.bf16.msra.mxu0 %v3360
    %3451 = vmatprep.subr.bf16.mxu0 0
    %3452 = vmatpush1.bf16.msra.mxu0 %v3361
    %3453 = vmatprep.subr.bf16.mxu0 0
    %3454 = vmatpush1.bf16.msra.mxu0 %v3362
    %3455 = vmatprep.subr.bf16.mxu0 0
    %3456 = vmatpush1.bf16.msra.mxu0 %v3363
    %3457 = vmatprep.subr.bf16.mxu0 0
    %3458 = vmatpush1.bf16.msra.mxu0 %v3364
    %3459 = vmatprep.subr.bf16.mxu0 0
    %3460 = vmatpush1.bf16.msra.mxu0 %v3365
    %3461 = vmatprep.subr.bf16.mxu0 0
    %3462 = vmatpush1.bf16.msra.mxu0 %v3366
    %3463 = vmatprep.subr.bf16.mxu0 0
    %3464 = vmatpush1.bf16.msra.mxu0 %v3367
    %3465 = vmatprep.subr.bf16.mxu0 0
    %3466 = vmatpush1.bf16.msra.mxu0 %v3368
    %3467 = vmatprep.subr.bf16.mxu0 0
    %3468 = vmatpush1.bf16.msra.mxu0 %v3369
    %3469 = vmatprep.subr.bf16.mxu0 0
    %3470 = vmatpush1.bf16.msra.mxu0 %v3370
    %3471 = vmatprep.subr.bf16.mxu0 0
    %3472 = vmatpush1.bf16.msra.mxu0 %v3371
    %3473 = vmatprep.subr.bf16.mxu0 0
    %3474 = vmatpush1.bf16.msra.mxu0 %v3372
    %3475 = vmatprep.subr.bf16.mxu0 0
    %3476 = vmatpush1.bf16.msra.mxu0 %v3373
    %3477 = vmatprep.subr.bf16.mxu0 0
    %3478 = vmatpush1.bf16.msra.mxu0 %v3374
    %3479 = vmatprep.mubr.bf16.mxu0 %v3143
    %3480 = vmatmul.mubr.bf16.gmra.mrb[0].mxu0 %v3142
    %v3481 = vpop.f32.mrb[0].mxu0
    %v3482 = vadd.f32 %v3442, %v3481
    %v3483 = vpop.f32.mrb[0].mxu0
    %v3484 = vpop.f32.mrb[0].mxu0
    %v3485 = vpop.f32.mrb[0].mxu0
    %3486 = vdwg.mxu0
    %v3487 = vpack.c.bf16 %v3482, %v3482
    %3488 = vst [vmem:[%s6] sm:$0xf] %v3487
    // Predicated region
    $region46: #{clf_discriminator_forward.1} parent=1 // pred_check
      _
    $region47: #{clf_discriminator_forward.1} parent=1 // pred_check_branch
      %3490 = sbr.rel (0) target = $region49
    $region48: #{clf_discriminator_forward.1} parent=1 // pred_region
      _
    $region49: #{clf_discriminator_forward.1} parent=1 // pred_fallthru
      _
    // Predicated region
    $region50: #{clf_discriminator_forward.1} parent=1 // pred_check
      _
    $region51: #{clf_discriminator_forward.1} parent=1 // pred_check_branch
      %3492 = sbr.rel (0) target = $region53
    $region52: #{clf_discriminator_forward.1} parent=1 // pred_region
      _
    $region53: #{clf_discriminator_forward.1} parent=1 // pred_fallthru
      _
    %3493 = vsyncpa [#allocation3], 1
    %3494 = vsyncpa [#allocation5], 1
    %3495 = vsyncpa [#allocation8], 1

</llo_original>
